<compile_context>
chip_gen: v7x
topology: tpu7x:2x2x1
jax: 0.10.0
libtpu: 0.0.40
codegen_flags: <defaults>
</compile_context>

<pallas_src>
import functools

import jax
import jax.numpy as jnp
from jax.experimental import pallas as pl
from jax.experimental.pallas import tpu as pltpu

LANE = 128


# ----------------------------------------------------------------------------
# Small helpers
# ----------------------------------------------------------------------------
def _round_up(v, m):
    return (v + m - 1) // m * m


def _pad2d(a, rows, cols):
    r, c = a.shape
    return jnp.pad(a, ((0, rows - r), (0, cols - c)))


def _tile_config(n):
    """Row tile TM, node (reduction) tile TK, padded node count."""
    tk = 512 if n > 256 else 256      # 256-aligned for v6e/v7x MXU, 128-aligned for v5e
    tm = 256
    n_pad = _round_up(max(n, tm), tk)  # tk is a multiple of tm
    return n_pad, tm, tk


# ----------------------------------------------------------------------------
# Pallas kernel: one GINConv layer, tiled over (row tiles, node tiles)
# ----------------------------------------------------------------------------
def _gin_layer_kernel(a_ref, hk_ref, hi_ref, w_ref, b_ref, o_ref, obf_ref,
                      acc_ref, *, eps, apply_relu, apply_log_softmax, c_out):
    """acc[i] += A[i,k] @ h[k]; at last k: o[i] = act(((1+eps)h[i] + acc) @ W + b)."""
    k = pl.program_id(1)

    @pl.when(k == 0)
    def _init():
        acc_ref[...] = jnp.zeros_like(acc_ref)

    # Neighbor-sum aggregation on the MXU: bf16 x bf16 -> f32 accumulate.
    # Both operands are already bf16 in HBM, so no per-iteration VPU cast.
    acc_ref[...] += jnp.dot(
        a_ref[...], hk_ref[...], preferred_element_type=jnp.float32)

    @pl.when(k == pl.num_programs(1) - 1)
    def _epilogue():
        h_self = hi_ref[...]
        if eps != 0.0:                       # skip the multiply when eps == 0
            h_self = (1.0 + eps) * h_self
        h = h_self + acc_ref[...]
        out = jnp.dot(h, w_ref[...], preferred_element_type=jnp.float32)
        out = out + b_ref[...]
        if apply_relu:
            out = jnp.maximum(out, 0.0)
        if apply_log_softmax:
            # Row-wise log_softmax over the first c_out (valid) lanes only.
            lane_idx = jax.lax.broadcasted_iota(jnp.int32, out.shape, 1)
            valid = lane_idx < c_out
            masked = jnp.where(valid, out, -jnp.inf)
            m = jnp.max(masked, axis=1, keepdims=True)
            z = out - m
            ez = jnp.where(valid, jnp.exp(z), 0.0)
            lse = jnp.log(jnp.sum(ez, axis=1, keepdims=True))
            out = z - lse
        o_ref[...] = out                      # f32 activations (next self term / h@W)
        obf_ref[...] = out.astype(jnp.bfloat16)  # bf16 copy (next aggregation rhs)


def gin_conv_layer(adj_bf16, h_bf16, h_f32, w, b, *, tm, tk, eps=0.0,
                   apply_relu=False, apply_log_softmax=False, c_out=1):
    """One GINConv layer on padded operands.

    adj_bf16 : [N_pad, N_pad]    bf16 dense adjacency (A[dst, src] = edge count)
    h_bf16   : [N_pad, C_in_pad] bf16 activations (aggregation rhs)
    h_f32    : [N_pad, C_in_pad] f32 activations (self term / linear input)
    w        : [C_in_pad, C_out_pad] f32, b : [1, C_out_pad] f32
    Returns (out_f32, out_bf16), both [N_pad, C_out_pad].
    """
    n_pad = adj_bf16.shape[0]
    c_in_p = h_f32.shape[1]
    c_out_p = w.shape[1]
    grid = (n_pad // tm, n_pad // tk)

    kernel = functools.partial(
        _gin_layer_kernel, eps=eps, apply_relu=apply_relu,
        apply_log_softmax=apply_log_softmax, c_out=c_out)

    return pl.pallas_call(
        kernel,
        out_shape=(jax.ShapeDtypeStruct((n_pad, c_out_p), jnp.float32),
                   jax.ShapeDtypeStruct((n_pad, c_out_p), jnp.bfloat16)),
        grid_spec=pltpu.PrefetchScalarGridSpec(
            num_scalar_prefetch=0,
            grid=grid,
            in_specs=[
                pl.BlockSpec((tm, tk), lambda i, k: (i, k)),          # A tile
                pl.BlockSpec((tk, c_in_p), lambda i, k: (k, 0)),      # h bf16 (agg rhs)
                pl.BlockSpec((tm, c_in_p), lambda i, k: (i, 0)),      # h f32 (self term)
                pl.BlockSpec((c_in_p, c_out_p), lambda i, k: (0, 0)),  # W (resident)
                pl.BlockSpec((1, c_out_p), lambda i, k: (0, 0)),       # b (resident)
            ],
            out_specs=[
                pl.BlockSpec((tm, c_out_p), lambda i, k: (i, 0)),      # out f32
                pl.BlockSpec((tm, c_out_p), lambda i, k: (i, 0)),      # out bf16
            ],
            scratch_shapes=[pltpu.VMEM((tm, c_in_p), jnp.float32)],
        ),
        compiler_params=pltpu.CompilerParams(
            dimension_semantics=("parallel", "arbitrary"),
            vmem_limit_bytes=32 * 1024 * 1024,
        ),
    )(adj_bf16, h_bf16, h_f32, w, b)


# ----------------------------------------------------------------------------
# GIN forward (glue: adjacency build, padding, layer chaining)
# ----------------------------------------------------------------------------
def build_dense_adjacency(edge_index, num_nodes, n_pad):
    """A[dst, src] counts messages src -> dst (PyG convention); zero padded."""
    src = edge_index[0]
    dst = edge_index[1]
    adj = jnp.zeros((n_pad, n_pad), dtype=jnp.float32).at[dst, src].add(1.0)
    return adj.astype(jnp.bfloat16)   # integer counts <= 256 are exact in bf16


def _pad_linear(w, b):
    c_in, c_out = w.shape
    w_p = _pad2d(w.astype(jnp.float32), _round_up(c_in, LANE), _round_up(c_out, LANE))
    b_p = _pad2d(b.astype(jnp.float32).reshape(1, c_out), 1, _round_up(c_out, LANE))
    return w_p, b_p


def gin_forward(params, x, edge_index, dataset_name="Cora", eps=0.0):
    n, c_in = x.shape
    c_out = params["w3"].shape[1]

    n_pad, tm, tk = _tile_config(n)
    adj = build_dense_adjacency(edge_index, n, n_pad)

    x_p = _pad2d(x.astype(jnp.float32), n_pad, _round_up(c_in, LANE))
    x_bf = x_p.astype(jnp.bfloat16)
    w1, b1 = _pad_linear(params["w1"], params["b1"])
    w2, b2 = _pad_linear(params["w2"], params["b2"])
    w3, b3 = _pad_linear(params["w3"], params["b3"])

    flickr = dataset_name == "Flickr"

    # dropout(p=0.5, training=False) == identity
    h, h_bf = gin_conv_layer(adj, x_bf, x_p, w1, b1, tm=tm, tk=tk, eps=eps,
                             apply_relu=True)
    h, h_bf = gin_conv_layer(adj, h_bf, h, w2, b2, tm=tm, tk=tk, eps=eps,
                             apply_relu=True)
    h, _ = gin_conv_layer(adj, h_bf, h, w3, b3, tm=tm, tk=tk, eps=eps,
                          apply_relu=False, apply_log_softmax=flickr, c_out=c_out)

    return h[:n, :c_out]


# ----------------------------------------------------------------------------
# Pure-JAX reference (matches kernel's bf16 aggregation precision)
# ----------------------------------------------------------------------------
def reference_forward(params, x, edge_index, dataset_name="Cora", eps=0.0):
    n = x.shape[0]
    adj = jnp.zeros((n, n), jnp.float32).at[edge_index[1], edge_index[0]].add(1.0)
    adj = adj.astype(jnp.bfloat16)

    def layer(h, w, b, relu):
        agg = jnp.dot(adj, h.astype(jnp.bfloat16), preferred_element_type=jnp.float32)
        out = jnp.dot((1.0 + eps) * h + agg, w, preferred_element_type=jnp.float32) + b
        return jnp.maximum(out, 0.0) if relu else out

    h = layer(x.astype(jnp.float32), params["w1"], params["b1"], True)
    h = layer(h, params["w2"], params["b2"], True)
    h = layer(h, params["w3"], params["b3"], False)
    if dataset_name == "Flickr":
        h = jax.nn.log_softmax(h, axis=1)
    return h


# ----------------------------------------------------------------------------
# Deterministic parameter init (PyTorch Linear default: U(-1/sqrt(in), 1/sqrt(in)))
# ----------------------------------------------------------------------------
def init_params(key, in_channels, hidden_channels, out_channels):
    def linear(k, c_in, c_out):
        kw, kb = jax.random.split(k)
        bound = 1.0 / jnp.sqrt(jnp.float32(c_in))
        w = jax.random.uniform(kw, (c_out, c_in), jnp.float32, -bound, bound)
        b = jax.random.uniform(kb, (c_out,), jnp.float32, -bound, bound)
        return w.T, b   # store weight transposed [in, out] so the kernel does h @ W

    k1, k2, k3 = jax.random.split(key, 3)
    w1, b1 = linear(k1, in_channels, hidden_channels)
    w2, b2 = linear(k2, hidden_channels, hidden_channels)
    w3, b3 = linear(k3, hidden_channels, out_channels)
    return {"w1": w1, "b1": b1, "w2": w2, "b2": b2, "w3": w3, "b3": b3}


if __name__ == "__main__":
    key = jax.random.PRNGKey(0)
    k_x, k_e, k_p = jax.random.split(key, 3)

    num_nodes = 1000          # pads to 1024 -> grid (4 row tiles, 2 reduction tiles)
    num_edges = 4000
    in_channels, hidden_channels, out_channels = 16, 64, 7

    x = jax.random.normal(k_x, (num_nodes, in_channels), dtype=jnp.float32)
    edge_index = jax.random.randint(k_e, (2, num_edges), 0, num_nodes, dtype=jnp.int32)

    params = init_params(k_p, in_channels, hidden_channels, out_channels)

    # plain-graph branch (raw logits) and Flickr branch (log_softmax over classes)
    out_plain = gin_forward(params, x, edge_index, dataset_name="Cora")
    out_flickr = gin_forward(params, x, edge_index, dataset_name="Flickr")
    jax.block_until_ready(out_plain)
    jax.block_until_ready(out_flickr)

    assert out_plain.shape == (num_nodes, out_channels)
    assert out_flickr.shape == (num_nodes, out_channels)
    # log_softmax rows must sum to 1 in prob space
    assert jnp.allclose(jnp.sum(jnp.exp(out_flickr), axis=1), 1.0, atol=1e-3)

    # correctness vs precision-matched pure-JAX reference
    ref_plain = reference_forward(params, x, edge_index, dataset_name="Cora")
    ref_flickr = reference_forward(params, x, edge_index, dataset_name="Flickr")
    assert jnp.allclose(out_plain, ref_plain, atol=3e-2, rtol=3e-2)
    assert jnp.allclose(out_flickr, ref_flickr, atol=3e-2, rtol=3e-2)

    print("KERNEL_OK")
</pallas_src>

<mosaic_0001>
module attributes {stable_mosaic.version = 11 : i64} {
  func.func @_gin_layer_kernel(%arg0: i32, %arg1: i32, %arg2: memref<256x512xbf16, #tpu.memory_space<vmem>>, %arg3: memref<512x128xbf16, #tpu.memory_space<vmem>>, %arg4: memref<256x128xf32, #tpu.memory_space<vmem>>, %arg5: memref<128x128xf32, #tpu.memory_space<vmem>>, %arg6: memref<1x128xf32, #tpu.memory_space<vmem>>, %arg7: memref<256x128xf32, #tpu.memory_space<vmem>>, %arg8: memref<256x128xbf16, #tpu.memory_space<vmem>>, %arg9: memref<256x128xf32, #tpu.memory_space<vmem>>) attributes {dimension_semantics = [#tpu.dimension_semantics<parallel>, #tpu.dimension_semantics<arbitrary>], iteration_bounds = array<i64: 4, 2>, scalar_prefetch = 0 : i64, scratch_operands = 1 : i64, tpu.core_type = #tpu.core_type<tc>, window_params = [{transform_indices = @transform_0, window_bounds = array<i64: 256, 512>}, {transform_indices = @transform_1, window_bounds = array<i64: 512, 128>}, {transform_indices = @transform_2, window_bounds = array<i64: 256, 128>}, {pipeline_mode = #tpu.pipeline_mode<synchronous>, transform_indices = @transform_3, window_bounds = array<i64: 128, 128>}, {pipeline_mode = #tpu.pipeline_mode<synchronous>, transform_indices = @transform_4, window_bounds = array<i64: 1, 128>}, {transform_indices = @transform_5, window_bounds = array<i64: 256, 128>}, {transform_indices = @transform_6, window_bounds = array<i64: 256, 128>}]} {
    %c0_i32 = arith.constant 0 : i32
    %0 = arith.cmpi eq, %arg1, %c0_i32 : i32
    %1 = arith.extui %0 : i1 to i32
    %c0_i32_0 = arith.constant 0 : i32
    %2 = arith.cmpi ne, %1, %c0_i32_0 : i32
    scf.if %2 {
      %cst_9 = arith.constant 0.000000e+00 : f32
      %12 = vector.broadcast %cst_9 : f32 to vector<256x128xf32>
      %c0_10 = arith.constant 0 : index
      %c0_11 = arith.constant 0 : index
      %13 = vector.load %arg9[%c0_10, %c0_11] : memref<256x128xf32, #tpu.memory_space<vmem>>, vector<256x128xf32>
      tpu.vector_store %arg9[%c0_10, %c0_11], %12 {strides = array<i32>} : memref<256x128xf32, #tpu.memory_space<vmem>>, vector<256x128xf32>,
    } else {
    }
    %c0 = arith.constant 0 : index
    %c0_1 = arith.constant 0 : index
    %3 = vector.load %arg9[%c0, %c0_1] : memref<256x128xf32, #tpu.memory_space<vmem>>, vector<256x128xf32>
    %c0_2 = arith.constant 0 : index
    %c0_3 = arith.constant 0 : index
    %4 = vector.load %arg2[%c0_2, %c0_3] : memref<256x512xbf16, #tpu.memory_space<vmem>>, vector<256x512xbf16>
    %c0_4 = arith.constant 0 : index
    %c0_5 = arith.constant 0 : index
    %5 = vector.load %arg3[%c0_4, %c0_5] : memref<512x128xbf16, #tpu.memory_space<vmem>>, vector<512x128xbf16>
    %cst = arith.constant dense<0.000000e+00> : vector<256x128xf32>
    %6 = tpu.matmul %4, %5, %cst {dimension_numbers = #tpu.dot_dimension_numbers<[1], [0], [0], [1], [0, 0, 1, 1], [], []>} : vector<256x512xbf16>, vector<512x128xbf16>, vector<256x128xf32> -> vector<256x128xf32>
    %7 = arith.addf %3, %6 : vector<256x128xf32>
    %c0_6 = arith.constant 0 : index
    %c0_7 = arith.constant 0 : index
    %8 = vector.load %arg9[%c0_6, %c0_7] : memref<256x128xf32, #tpu.memory_space<vmem>>, vector<256x128xf32>
    tpu.vector_store %arg9[%c0_6, %c0_7], %7 {strides = array<i32>} : memref<256x128xf32, #tpu.memory_space<vmem>>, vector<256x128xf32>,
    %c1_i32 = arith.constant 1 : i32
    %9 = arith.cmpi eq, %arg1, %c1_i32 : i32
    %10 = arith.extui %9 : i1 to i32
    %c0_i32_8 = arith.constant 0 : i32
    %11 = arith.cmpi ne, %10, %c0_i32_8 : i32
    scf.if %11 {
      %c0_9 = arith.constant 0 : index
      %c0_10 = arith.constant 0 : index
      %12 = vector.load %arg4[%c0_9, %c0_10] : memref<256x128xf32, #tpu.memory_space<vmem>>, vector<256x128xf32>
      %c0_11 = arith.constant 0 : index
      %c0_12 = arith.constant 0 : index
      %13 = vector.load %arg9[%c0_11, %c0_12] : memref<256x128xf32, #tpu.memory_space<vmem>>, vector<256x128xf32>
      %14 = arith.addf %12, %13 : vector<256x128xf32>
      %c0_13 = arith.constant 0 : index
      %c0_14 = arith.constant 0 : index
      %15 = vector.load %arg5[%c0_13, %c0_14] : memref<128x128xf32, #tpu.memory_space<vmem>>, vector<128x128xf32>
      %cst_15 = arith.constant dense<0.000000e+00> : vector<256x128xf32>
      %16 = tpu.matmul %14, %15, %cst_15 {dimension_numbers = #tpu.dot_dimension_numbers<[1], [0], [0], [1], [0, 0, 1, 1], [], []>} : vector<256x128xf32>, vector<128x128xf32>, vector<256x128xf32> -> vector<256x128xf32>
      %c0_16 = arith.constant 0 : index
      %c0_17 = arith.constant 0 : index
      %17 = vector.load %arg6[%c0_16, %c0_17] : memref<1x128xf32, #tpu.memory_space<vmem>>, vector<1x128xf32>
      %18 = vector.broadcast %17 : vector<1x128xf32> to vector<256x128xf32>
      %19 = arith.addf %16, %18 : vector<256x128xf32>
      %cst_18 = arith.constant 0.000000e+00 : f32
      %20 = vector.broadcast %cst_18 : f32 to vector<256x128xf32>
      %21 = arith.maximumf %19, %20 : vector<256x128xf32>
      %c0_19 = arith.constant 0 : index
      %c0_20 = arith.constant 0 : index
      %22 = vector.load %arg7[%c0_19, %c0_20] : memref<256x128xf32, #tpu.memory_space<vmem>>, vector<256x128xf32>
      tpu.vector_store %arg7[%c0_19, %c0_20], %21 {strides = array<i32>} : memref<256x128xf32, #tpu.memory_space<vmem>>, vector<256x128xf32>,
      %23 = arith.truncf %21 : vector<256x128xf32> to vector<256x128xbf16>
      %c0_21 = arith.constant 0 : index
      %c0_22 = arith.constant 0 : index
      %24 = vector.load %arg8[%c0_21, %c0_22] : memref<256x128xbf16, #tpu.memory_space<vmem>>, vector<256x128xbf16>
      tpu.vector_store %arg8[%c0_21, %c0_22], %23 {strides = array<i32>} : memref<256x128xbf16, #tpu.memory_space<vmem>>, vector<256x128xbf16>,
    } else {
    }
    return
  }
  func.func @transform_0(%arg0: i32, %arg1: i32) -> (i32, i32) {
    %c0_i32 = arith.constant 0 : i32
    return %arg0, %arg1 : i32, i32
  }
  func.func @transform_1(%arg0: i32, %arg1: i32) -> (i32, i32) {
    %c0_i32 = arith.constant 0 : i32
    %c0_i32_0 = arith.constant 0 : i32
    return %arg1, %c0_i32 : i32, i32
  }
  func.func @transform_2(%arg0: i32, %arg1: i32) -> (i32, i32) {
    %c0_i32 = arith.constant 0 : i32
    %c0_i32_0 = arith.constant 0 : i32
    return %arg0, %c0_i32 : i32, i32
  }
  func.func @transform_3(%arg0: i32, %arg1: i32) -> (i32, i32) {
    %c0_i32 = arith.constant 0 : i32
    %c0_i32_0 = arith.constant 0 : i32
    %c0_i32_1 = arith.constant 0 : i32
    return %c0_i32, %c0_i32_0 : i32, i32
  }
  func.func @transform_4(%arg0: i32, %arg1: i32) -> (i32, i32) {
    %c0_i32 = arith.constant 0 : i32
    %c0_i32_0 = arith.constant 0 : i32
    %c0_i32_1 = arith.constant 0 : i32
    return %c0_i32, %c0_i32_0 : i32, i32
  }
  func.func @transform_5(%arg0: i32, %arg1: i32) -> (i32, i32) {
    %c0_i32 = arith.constant 0 : i32
    %c0_i32_0 = arith.constant 0 : i32
    return %arg0, %c0_i32 : i32, i32
  }
  func.func @transform_6(%arg0: i32, %arg1: i32) -> (i32, i32) {
    %c0_i32 = arith.constant 0 : i32
    %c0_i32_0 = arith.constant 0 : i32
    return %arg0, %c0_i32 : i32, i32
  }
}

</mosaic_0001>

<llo_original>
// kernel: tpu_custom_call.1
$region0: #{tpu_custom_call.1}
  #allocation0 [shape = 'u32[]', space=smem, size = 0x4, offset = 0x4, fixed_abs, tag = 'smem constant byte address 0x4 - core index']
  #allocation1 [shape = 'u32[144,128]{1,0:T(1,128)}', space=vmem, size = 0x12000, scoped, tag = 'internal scratch']
  #allocation2 [shape = 'f32[256,128]{1,0:T(8,128)}', space=vmem, size = 0x20000, scoped, tag = 'scratch operand']
  %s0 = inlined_call_operand.hbm [shape: bf16[1024,1024], index: 0, kind: input, shape index: {}]
  %s1 = inlined_call_operand.hbm [shape: bf16[1024,128], index: 1, kind: input, shape index: {}]
  %s2 = inlined_call_operand.hbm [shape: f32[1024,128], index: 2, kind: input, shape index: {}]
  %s3 = inlined_call_operand.hbm [shape: f32[128,128], index: 3, kind: input, shape index: {}]
  %s4 = inlined_call_operand.hbm [shape: f32[1,128], index: 4, kind: input, shape index: {}]
  %s5 = inlined_call_operand.hbm [shape: f32[1024,128], index: 5, kind: output, shape index: {0}]
  %s6 = inlined_call_operand.hbm [shape: bf16[1024,128], index: 6, kind: output, shape index: {1}]
  %7 = xla_tuple %s5, %s6
  %s8 = sld [smem:[#allocation0]]
  $region89: #{tpu_custom_call.1} parent=0
    _
  %s10 = ssub.s32 1, %s8
  %s11 = scalar_select 0, %s10, %s8
  $region1: #{tpu_custom_call.1} parent=0
    #allocation3 [shape = 'u8[524288]{0}', space=vmem, size = 0x80000, scoped, tag = 'input window, operand 0']
    #allocation4 [shape = 's32[2]{0}', space=sflag, size = 0x8, scoped, tag = 'scoped memory for tpu_custom_call.1']
    #allocation5 [shape = 's32[2]{0}', space=sflag, size = 0x8, scoped, tag = 'scoped memory for tpu_custom_call.1']
    #allocation6 [shape = 'u8[262144]{0}', space=vmem, size = 0x40000, scoped, tag = 'input window, operand 1']
    #allocation7 [shape = 's32[2]{0}', space=sflag, size = 0x8, scoped, tag = 'scoped memory for tpu_custom_call.1']
    #allocation8 [shape = 'u8[262144]{0}', space=vmem, size = 0x40000, scoped, tag = 'input window, operand 2']
    #allocation9 [shape = 'u8[65536]{0}', space=vmem, size = 0x10000, scoped, tag = 'input window, operand 3, single buffered']
    #allocation10 [shape = 's32[1]{0}', space=sflag, size = 0x4, scoped, tag = 'scoped memory for tpu_custom_call.1']
    #allocation11 [shape = 'u8[512]{0}', space=vmem, size = 0x400, scoped, tag = 'input window, operand 4, single buffered']
    #allocation12 [shape = 'u8[262144]{0}', space=vmem, size = 0x40000, scoped, tag = 'output window, operand 0']
    #allocation13 [shape = 'u8[131072]{0}', space=vmem, size = 0x20000, scoped, tag = 'output window, operand 1']
    #allocation14 [shape = 's32[2]{0}', space=sflag, size = 0x8, scoped, tag = 'scoped memory for tpu_custom_call.1']
    %12 = vsyncpa [#allocation4], 0
    %s13 = scalar_lea.sflag [#allocation4], 1
    %14 = vsyncpa %s13, 0
    %15 = vsyncpa [#allocation7], 0
    %s16 = scalar_lea.sflag [#allocation7], 1
    %17 = vsyncpa %s16, 0
    %18 = vsyncpa [#allocation10], 0
    %19 = vsyncpa [#allocation5], 0
    %s20 = scalar_lea.sflag [#allocation5], 1
    %21 = vsyncpa %s20, 0
    %22 = vsyncpa [#allocation14], 0
    %s23 = scalar_lea.sflag [#allocation14], 1
    %24 = vsyncpa %s23, 0
    loop: start=0, step=1, limit=10
    $region2: #{tpu_custom_call.1} parent=1 // loop_pre_header
      _
    $region3: #{tpu_custom_call.1} parent=1 // loop_header
      %s26 = sphi 0, %s30
      %p27 = scmp.ge.s32.totalorder %s26, 10
      %s33 = sphi 0, %s45
      %s34 = sphi 0, %s41
      %s35 = sphi 0, %s33
      %s36 = sphi 0, %s34
      %s37 = sphi 0, %s35
      %s38 = sphi 0, %s36
      %s50 = sphi 0, %s52
      %s53 = sphi 0, %s50
      %s54 = sphi 0, %s53
      %s70 = sphi 0, %s54
      %s76 = sphi 0, %s78
      %s79 = sphi 0, %s76
      %s80 = sphi 0, %s79
      %s96 = sphi 0, %s80
      %s102 = sphi 0, %s104
      %s105 = sphi 0, %s102
      %s106 = sphi 0, %s105
      %s122 = sphi 0, %s106
      %s126 = sphi 0, %s126
      %s128 = sphi 0, %s126
      %s129 = sphi 0, %s128
      %s143 = sphi 0, %s129
      %s147 = sphi 0, %s147
      %s149 = sphi 0, %s147
      %s150 = sphi 0, %s149
      %s164 = sphi 0, %s150
      %s170 = sphi 0, %s172
      %s173 = sphi 0, %s170
      %s174 = sphi 0, %s173
      %s190 = sphi 0, %s174
      %s196 = sphi 0, %s198
      %s199 = sphi 0, %s196
      %s200 = sphi 0, %s199
      %s216 = sphi 0, %s200
    $region4: #{tpu_custom_call.1} parent=1 // loop_header_branch
      %29 = sbr.rel (%p27) target = $region8
    $region5: #{tpu_custom_call.1} parent=1 // loop_body
      %s31 = ssub.s32 %s26, 1
      %s32 = ssub.s32 %s26, 2
      %s39 = sadd.s32 1, %s34
      %p40 = scmp.ge.s32.totalorder %s39, 2
      %s41 = scalar_select %p40, 0, %s39
      %s42 = sadd.s32 1, %s33
      %s43 = scalar_select %p40, %s42, %s33
      %p44 = scmp.ge.s32.totalorder %s43, 4
      %s45 = scalar_select %p44, 0, %s43
      %s46 = ssub.s32 %s33, %s45
      %s47 = ssub.s32 %s34, %s41
      %s48 = sor.u32 %s46, %s47
      %p49 = scmp.eq.s32.totalorder %s48, 0
      %s51 = sadd.s32 %s50, 1
      %s52 = scalar_select %p49, %s50, %s51
      %p55 = pneg %p49
      %p56 = scmp.eq.s32.totalorder %s26, 7
      %p57 = por %p55, %p56
      %p58 = scmp.ne.s32.totalorder %s50, %s53
      %p59 = scmp.eq.s32.totalorder %s26, 0
      %p60 = por %p58, %p59
      %p61 = scmp.ne.s32.totalorder %s50, %s53
      %p62 = scmp.eq.s32.totalorder %s31, 7
      %p63 = por %p61, %p62
      %p64 = scmp.ne.s32.totalorder %s53, %s54
      %p65 = scmp.eq.s32.totalorder %s31, 0
      %p66 = por %p64, %p65
      %p67 = scmp.ne.s32.totalorder %s53, %s54
      %p68 = scmp.eq.s32.totalorder %s32, 7
      %p69 = por %p67, %p68
      %p71 = scmp.ne.s32.totalorder %s54, %s70
      %p72 = scmp.eq.s32.totalorder %s32, 0
      %p73 = por %p71, %p72
      %s74 = ssub.s32 %s34, %s41
      %p75 = scmp.eq.s32.totalorder %s74, 0
      %s77 = sadd.s32 %s76, 1
      %s78 = scalar_select %p75, %s76, %s77
      %p81 = pneg %p75
      %p82 = scmp.eq.s32.totalorder %s26, 7
      %p83 = por %p81, %p82
      %p84 = scmp.ne.s32.totalorder %s76, %s79
      %p85 = scmp.eq.s32.totalorder %s26, 0
      %p86 = por %p84, %p85
      %p87 = scmp.ne.s32.totalorder %s76, %s79
      %p88 = scmp.eq.s32.totalorder %s31, 7
      %p89 = por %p87, %p88
      %p90 = scmp.ne.s32.totalorder %s79, %s80
      %p91 = scmp.eq.s32.totalorder %s31, 0
      %p92 = por %p90, %p91
      %p93 = scmp.ne.s32.totalorder %s79, %s80
      %p94 = scmp.eq.s32.totalorder %s32, 7
      %p95 = por %p93, %p94
      %p97 = scmp.ne.s32.totalorder %s80, %s96
      %p98 = scmp.eq.s32.totalorder %s32, 0
      %p99 = por %p97, %p98
      %s100 = ssub.s32 %s33, %s45
      %p101 = scmp.eq.s32.totalorder %s100, 0
      %s103 = sadd.s32 %s102, 1
      %s104 = scalar_select %p101, %s102, %s103
      %p107 = pneg %p101
      %p108 = scmp.eq.s32.totalorder %s26, 7
      %p109 = por %p107, %p108
      %p110 = scmp.ne.s32.totalorder %s102, %s105
      %p111 = scmp.eq.s32.totalorder %s26, 0
      %p112 = por %p110, %p111
      %p113 = scmp.ne.s32.totalorder %s102, %s105
      %p114 = scmp.eq.s32.totalorder %s31, 7
      %p115 = por %p113, %p114
      %p116 = scmp.ne.s32.totalorder %s105, %s106
      %p117 = scmp.eq.s32.totalorder %s31, 0
      %p118 = por %p116, %p117
      %p119 = scmp.ne.s32.totalorder %s105, %s106
      %p120 = scmp.eq.s32.totalorder %s32, 7
      %p121 = por %p119, %p120
      %p123 = scmp.ne.s32.totalorder %s106, %s122
      %p124 = scmp.eq.s32.totalorder %s32, 0
      %p125 = por %p123, %p124
      %s127 = sadd.s32 %s126, 1
      %p130 = scmp.eq.s32.totalorder %s26, 7
      %p131 = scmp.ne.s32.totalorder %s126, %s128
      %p132 = scmp.eq.s32.totalorder %s26, 0
      %p133 = por %p131, %p132
      %p134 = scmp.ne.s32.totalorder %s126, %s128
      %p135 = scmp.eq.s32.totalorder %s31, 7
      %p136 = por %p134, %p135
      %p137 = scmp.ne.s32.totalorder %s128, %s129
      %p138 = scmp.eq.s32.totalorder %s31, 0
      %p139 = por %p137, %p138
      %p140 = scmp.ne.s32.totalorder %s128, %s129
      %p141 = scmp.eq.s32.totalorder %s32, 7
      %p142 = por %p140, %p141
      %p144 = scmp.ne.s32.totalorder %s129, %s143
      %p145 = scmp.eq.s32.totalorder %s32, 0
      %p146 = por %p144, %p145
      %s148 = sadd.s32 %s147, 1
      %p151 = scmp.eq.s32.totalorder %s26, 7
      %p152 = scmp.ne.s32.totalorder %s147, %s149
      %p153 = scmp.eq.s32.totalorder %s26, 0
      %p154 = por %p152, %p153
      %p155 = scmp.ne.s32.totalorder %s147, %s149
      %p156 = scmp.eq.s32.totalorder %s31, 7
      %p157 = por %p155, %p156
      %p158 = scmp.ne.s32.totalorder %s149, %s150
      %p159 = scmp.eq.s32.totalorder %s31, 0
      %p160 = por %p158, %p159
      %p161 = scmp.ne.s32.totalorder %s149, %s150
      %p162 = scmp.eq.s32.totalorder %s32, 7
      %p163 = por %p161, %p162
      %p165 = scmp.ne.s32.totalorder %s150, %s164
      %p166 = scmp.eq.s32.totalorder %s32, 0
      %p167 = por %p165, %p166
      %s168 = ssub.s32 %s33, %s45
      %p169 = scmp.eq.s32.totalorder %s168, 0
      %s171 = sadd.s32 %s170, 1
      %s172 = scalar_select %p169, %s170, %s171
      %p175 = pneg %p169
      %p176 = scmp.eq.s32.totalorder %s26, 7
      %p177 = por %p175, %p176
      %p178 = scmp.ne.s32.totalorder %s170, %s173
      %p179 = scmp.eq.s32.totalorder %s26, 0
      %p180 = por %p178, %p179
      %p181 = scmp.ne.s32.totalorder %s170, %s173
      %p182 = scmp.eq.s32.totalorder %s31, 7
      %p183 = por %p181, %p182
      %p184 = scmp.ne.s32.totalorder %s173, %s174
      %p185 = scmp.eq.s32.totalorder %s31, 0
      %p186 = por %p184, %p185
      %p187 = scmp.ne.s32.totalorder %s173, %s174
      %p188 = scmp.eq.s32.totalorder %s32, 7
      %p189 = por %p187, %p188
      %p191 = scmp.ne.s32.totalorder %s174, %s190
      %p192 = scmp.eq.s32.totalorder %s32, 0
      %p193 = por %p191, %p192
      %s194 = ssub.s32 %s33, %s45
      %p195 = scmp.eq.s32.totalorder %s194, 0
      %s197 = sadd.s32 %s196, 1
      %s198 = scalar_select %p195, %s196, %s197
      %p201 = pneg %p195
      %p202 = scmp.eq.s32.totalorder %s26, 7
      %p203 = por %p201, %p202
      %p204 = scmp.ne.s32.totalorder %s196, %s199
      %p205 = scmp.eq.s32.totalorder %s26, 0
      %p206 = por %p204, %p205
      %p207 = scmp.ne.s32.totalorder %s196, %s199
      %p208 = scmp.eq.s32.totalorder %s31, 7
      %p209 = por %p207, %p208
      %p210 = scmp.ne.s32.totalorder %s199, %s200
      %p211 = scmp.eq.s32.totalorder %s31, 0
      %p212 = por %p210, %p211
      %p213 = scmp.ne.s32.totalorder %s199, %s200
      %p214 = scmp.eq.s32.totalorder %s32, 7
      %p215 = por %p213, %p214
      %p217 = scmp.ne.s32.totalorder %s200, %s216
      %p218 = scmp.eq.s32.totalorder %s32, 0
      %p219 = por %p217, %p218
      %p220 = scmp.le.s32.totalorder 1, %s26
      %p221 = scmp.lt.s32.totalorder %s26, 9
      %p222 = pnand %p220, %p221
      %p223 = pneg %p222
      // Predicated region
      $region9: #{tpu_custom_call.1} parent=5 // pred_check
        _
      $region10: #{tpu_custom_call.1} parent=5 // pred_check_branch
        %225 = sbr.rel (%p222) target = $region12
      $region11: #{tpu_custom_call.1} parent=5 // pred_region
        %s226 = ssub.s32 %s26, 1
        // Predicated region
        $region13: #{tpu_custom_call.1} parent=11 // pred_check
          %p227 = pneg %p139
        $region14: #{tpu_custom_call.1} parent=11 // pred_check_branch
          %229 = sbr.rel (%p227) target = $region16
        $region15: #{tpu_custom_call.1} parent=11 // pred_region
          %s231 = ssub.s32 2048, 2048
          %232 = vsyncadd [#allocation10], %s231
          %s233 = sshll.u32 [#allocation9], 4
          %s234 = int_to_ptr.vmem [resolvable:$true] %s233
          %239 = dma.hbm_to_vmem [thread:$0]  %s3, 2048, %s234, [#allocation10], 128, 128, 8
        $region16: #{tpu_custom_call.1} parent=11 // pred_fallthru
          _
        // Predicated region
        $region17: #{tpu_custom_call.1} parent=11 // pred_check
          %p240 = pneg %p160
        $region18: #{tpu_custom_call.1} parent=11 // pred_check_branch
          %242 = sbr.rel (%p240) target = $region20
        $region19: #{tpu_custom_call.1} parent=11 // pred_region
          %s244 = ssub.s32 16, 16
          %245 = vsyncadd [#allocation10], %s244
          %s247 = sshll.u32 [#allocation11], 4
          %s248 = int_to_ptr.vmem [resolvable:$true] %s247
          %250 = dma.hbm_to_vmem [thread:$0]  %s4, 16, %s248, [#allocation10]
        $region20: #{tpu_custom_call.1} parent=11 // pred_fallthru
          _
      $region12: #{tpu_custom_call.1} parent=5 // pred_fallthru
        _
      %p251 = scmp.lt.s32.totalorder %s26, 8
      // Predicated region
      $region21: #{tpu_custom_call.1} parent=5 // pred_check
        %p252 = pneg %p251
      $region22: #{tpu_custom_call.1} parent=5 // pred_check_branch
        %254 = sbr.rel (%p252) target = $region24
      $region23: #{tpu_custom_call.1} parent=5 // pred_region
        // Predicated region
        $region25: #{tpu_custom_call.1} parent=23 // pred_check
          %p255 = pneg %p60
        $region26: #{tpu_custom_call.1} parent=23 // pred_check_branch
          %257 = sbr.rel (%p255) target = $region28
        $region27: #{tpu_custom_call.1} parent=23 // pred_region
          %s258 = sand.u32 %s50, 1
          %s259 = scalar_lea.sflag [#allocation4], %s258
          %s260 = sand.u32 %s50, 1
          %s261 = smul.addr %s260, 512
          %s262 = scalar_lea.vmem [#allocation3], %s261
          %s263 = smul.u32 32, %s33
          %s264 = smul.u32 4, %s34
          %s266 = ssub.s32 8192, 8192
          %267 = vsyncadd %s259, %s266
          %s268 = smul.addr %s263, 8
          %s269 = sadd.s32 %s264, %s268
          %s270 = smul.addr %s269, 64
          %s271 = scalar_lea.hbm %s0, %s270
          %s272 = sshll.u32 %s262, 4
          %s273 = int_to_ptr.vmem [resolvable:$true] %s272
          %278 = dma.hbm_to_vmem [thread:$0]  %s271, 8192, %s273, %s259, 512, 256, 16
        $region28: #{tpu_custom_call.1} parent=23 // pred_fallthru
          _
        // Predicated region
        $region29: #{tpu_custom_call.1} parent=23 // pred_check
          %p279 = pneg %p86
        $region30: #{tpu_custom_call.1} parent=23 // pred_check_branch
          %281 = sbr.rel (%p279) target = $region32
        $region31: #{tpu_custom_call.1} parent=23 // pred_region
          %s282 = sand.u32 %s26, 1
          %s283 = scalar_lea.sflag [#allocation7], %s282
          %s284 = sand.u32 %s76, 1
          %s285 = smul.addr %s284, 256
          %s286 = scalar_lea.vmem [#allocation6], %s285
          %s287 = smul.u32 64, %s34
          %s289 = ssub.s32 4096, 4096
          %290 = vsyncadd %s283, %s289
          %s291 = smul.addr %s287, 64
          %s292 = scalar_lea.hbm %s1, %s291
          %s293 = sshll.u32 %s286, 4
          %s294 = int_to_ptr.vmem [resolvable:$true] %s293
          %299 = dma.hbm_to_vmem [thread:$0]  %s292, 4096, %s294, %s283, 64, 64, 4
        $region32: #{tpu_custom_call.1} parent=23 // pred_fallthru
          _
        // Predicated region
        $region33: #{tpu_custom_call.1} parent=23 // pred_check
          %p300 = pneg %p112
        $region34: #{tpu_custom_call.1} parent=23 // pred_check_branch
          %302 = sbr.rel (%p300) target = $region36
        $region35: #{tpu_custom_call.1} parent=23 // pred_region
          %s303 = sand.u32 %s26, 1
          %s304 = scalar_lea.sflag [#allocation7], %s303
          %s305 = sand.u32 %s102, 1
          %s306 = smul.addr %s305, 256
          %s307 = scalar_lea.vmem [#allocation8], %s306
          %s308 = smul.u32 32, %s33
          %s310 = ssub.s32 4096, 4096
          %311 = vsyncadd %s304, %s310
          %s312 = smul.addr %s308, 128
          %s313 = scalar_lea.hbm %s2, %s312
          %s314 = sshll.u32 %s307, 4
          %s315 = int_to_ptr.vmem [resolvable:$true] %s314
          %320 = dma.hbm_to_vmem [thread:$0]  %s313, 4096, %s315, %s304, 128, 128, 8
        $region36: #{tpu_custom_call.1} parent=23 // pred_fallthru
          _
      $region24: #{tpu_custom_call.1} parent=5 // pred_fallthru
        _
      %p321 = scmp.le.s32.totalorder 1, %s26
      %p322 = scmp.lt.s32.totalorder %s26, 9
      %p323 = pnand %p321, %p322
      %p324 = pneg %p323
      // Predicated region
      $region37: #{tpu_custom_call.1} parent=5 // pred_check
        _
      $region38: #{tpu_custom_call.1} parent=5 // pred_check_branch
        %326 = sbr.rel (%p323) target = $region40
      $region39: #{tpu_custom_call.1} parent=5 // pred_region
        %s327 = ssub.s32 %s26, 1
        %s328 = sand.u32 %s53, 1
        %s329 = scalar_lea.sflag [#allocation4], %s328
        %s330 = sand.u32 %s53, 1
        %s331 = smul.addr %s330, 512
        %s332 = scalar_lea.vmem [#allocation3], %s331
        // Predicated region
        $region41: #{tpu_custom_call.1} parent=39 // pred_check
          %p333 = pneg %p66
        $region42: #{tpu_custom_call.1} parent=39 // pred_check_branch
          %335 = sbr.rel (%p333) target = $region44
        $region43: #{tpu_custom_call.1} parent=39 // pred_region
          %336 = dma.done %s329, 8192
        $region44: #{tpu_custom_call.1} parent=39 // pred_fallthru
          _
        %s337 = sand.u32 %s31, 1
        %s338 = scalar_lea.sflag [#allocation7], %s337
        %s339 = sand.u32 %s79, 1
        %s340 = smul.addr %s339, 256
        %s341 = scalar_lea.vmem [#allocation6], %s340
        // Predicated region
        $region45: #{tpu_custom_call.1} parent=39 // pred_check
          %p342 = pneg %p92
        $region46: #{tpu_custom_call.1} parent=39 // pred_check_branch
          %344 = sbr.rel (%p342) target = $region48
        $region47: #{tpu_custom_call.1} parent=39 // pred_region
          %345 = dma.done %s338, 4096
        $region48: #{tpu_custom_call.1} parent=39 // pred_fallthru
          _
        %s346 = sand.u32 %s31, 1
        %s347 = scalar_lea.sflag [#allocation7], %s346
        %s348 = sand.u32 %s105, 1
        %s349 = smul.addr %s348, 256
        %s350 = scalar_lea.vmem [#allocation8], %s349
        // Predicated region
        $region49: #{tpu_custom_call.1} parent=39 // pred_check
          %p351 = pneg %p118
        $region50: #{tpu_custom_call.1} parent=39 // pred_check_branch
          %353 = sbr.rel (%p351) target = $region52
        $region51: #{tpu_custom_call.1} parent=39 // pred_region
          %354 = dma.done %s347, 4096
        $region52: #{tpu_custom_call.1} parent=39 // pred_fallthru
          _
        // Predicated region
        $region53: #{tpu_custom_call.1} parent=39 // pred_check
          %p355 = pneg %p139
        $region54: #{tpu_custom_call.1} parent=39 // pred_check_branch
          %357 = sbr.rel (%p355) target = $region56
        $region55: #{tpu_custom_call.1} parent=39 // pred_region
          %358 = dma.done [#allocation10], 2048
        $region56: #{tpu_custom_call.1} parent=39 // pred_fallthru
          _
        // Predicated region
        $region57: #{tpu_custom_call.1} parent=39 // pred_check
          %p359 = pneg %p160
        $region58: #{tpu_custom_call.1} parent=39 // pred_check_branch
          %361 = sbr.rel (%p359) target = $region60
        $region59: #{tpu_custom_call.1} parent=39 // pred_region
          %362 = dma.done [#allocation10], 16
        $region60: #{tpu_custom_call.1} parent=39 // pred_fallthru
          _
        %s363 = sand.u32 %s53, 1
        %s364 = scalar_lea.sflag [#allocation4], %s363
        %s365 = sand.u32 %s53, 1
        %s366 = smul.addr %s365, 512
        %s367 = scalar_lea.vmem [#allocation3], %s366
        %p368 = pneg %p66
        %p369 = pneg %p63
        %s370 = sand.u32 %s31, 1
        %s371 = scalar_lea.sflag [#allocation7], %s370
        %s372 = sand.u32 %s79, 1
        %s373 = smul.addr %s372, 256
        %s374 = scalar_lea.vmem [#allocation6], %s373
        %p375 = pneg %p92
        %p376 = pneg %p89
        %s377 = sand.u32 %s31, 1
        %s378 = scalar_lea.sflag [#allocation7], %s377
        %s379 = sand.u32 %s105, 1
        %s380 = smul.addr %s379, 256
        %s381 = scalar_lea.vmem [#allocation8], %s380
        %p382 = pneg %p118
        %p383 = pneg %p115
        %p384 = pneg %p139
        %p385 = pneg %p136
        %p386 = pneg %p160
        %p387 = pneg %p157
        %p388 = pneg %p186
        %p389 = pneg %p183
        %s390 = sand.u32 %s173, 1
        %s391 = scalar_lea.sflag [#allocation5], %s390
        %s392 = sand.u32 %s173, 1
        %s393 = smul.addr %s392, 256
        %s394 = scalar_lea.vmem [#allocation12], %s393
        %p395 = pneg %p212
        %p396 = pneg %p209
        %s397 = sand.u32 %s199, 1
        %s398 = scalar_lea.sflag [#allocation14], %s397
        %s399 = sand.u32 %s199, 1
        %s400 = smul.addr %s399, 128
        %s401 = scalar_lea.vmem [#allocation13], %s400
        %s402 = smul.u32 32, %s35
        %s403 = smul.u32 4, %s36
        %s404 = smul.u32 64, %s36
        %s405 = smul.u32 32, %s35
        %s406 = smul.u32 32, %s35
        %s407 = smul.u32 32, %s35
        %p409 = scmp.eq.s32.totalorder %s36, 0
        // Predicated region
        $region61: #{tpu_custom_call.1} parent=39 // pred_check
          %p410 = pneg %p409
        $region62: #{tpu_custom_call.1} parent=39 // pred_check_branch
          %412 = sbr.rel (%p410) target = $region64
        $region63: #{tpu_custom_call.1} parent=39 // pred_region
          %413 = vst [vmem:[#allocation2] sm:$0xff] 0.0
          %414 = vst [vmem:[#allocation2 + $0x8] sm:$0xff] 0.0
          %415 = vst [vmem:[#allocation2 + $0x10] sm:$0xff] 0.0
          %416 = vst [vmem:[#allocation2 + $0x18] sm:$0xff] 0.0
          %417 = vst [vmem:[#allocation2 + $0x20] sm:$0xff] 0.0
          %418 = vst [vmem:[#allocation2 + $0x28] sm:$0xff] 0.0
          %419 = vst [vmem:[#allocation2 + $0x30] sm:$0xff] 0.0
          %420 = vst [vmem:[#allocation2 + $0x38] sm:$0xff] 0.0
          %421 = vst [vmem:[#allocation2 + $0x40] sm:$0xff] 0.0
          %422 = vst [vmem:[#allocation2 + $0x48] sm:$0xff] 0.0
          %423 = vst [vmem:[#allocation2 + $0x50] sm:$0xff] 0.0
          %424 = vst [vmem:[#allocation2 + $0x58] sm:$0xff] 0.0
          %425 = vst [vmem:[#allocation2 + $0x60] sm:$0xff] 0.0
          %426 = vst [vmem:[#allocation2 + $0x68] sm:$0xff] 0.0
          %427 = vst [vmem:[#allocation2 + $0x70] sm:$0xff] 0.0
          %428 = vst [vmem:[#allocation2 + $0x78] sm:$0xff] 0.0
          %429 = vst [vmem:[#allocation2 + $0x80] sm:$0xff] 0.0
          %430 = vst [vmem:[#allocation2 + $0x88] sm:$0xff] 0.0
          %431 = vst [vmem:[#allocation2 + $0x90] sm:$0xff] 0.0
          %432 = vst [vmem:[#allocation2 + $0x98] sm:$0xff] 0.0
          %433 = vst [vmem:[#allocation2 + $0xa0] sm:$0xff] 0.0
          %434 = vst [vmem:[#allocation2 + $0xa8] sm:$0xff] 0.0
          %435 = vst [vmem:[#allocation2 + $0xb0] sm:$0xff] 0.0
          %436 = vst [vmem:[#allocation2 + $0xb8] sm:$0xff] 0.0
          %437 = vst [vmem:[#allocation2 + $0xc0] sm:$0xff] 0.0
          %438 = vst [vmem:[#allocation2 + $0xc8] sm:$0xff] 0.0
          %439 = vst [vmem:[#allocation2 + $0xd0] sm:$0xff] 0.0
          %440 = vst [vmem:[#allocation2 + $0xd8] sm:$0xff] 0.0
          %441 = vst [vmem:[#allocation2 + $0xe0] sm:$0xff] 0.0
          %442 = vst [vmem:[#allocation2 + $0xe8] sm:$0xff] 0.0
          %443 = vst [vmem:[#allocation2 + $0xf0] sm:$0xff] 0.0
          %444 = vst [vmem:[#allocation2 + $0xf8] sm:$0xff] 0.0
        $region64: #{tpu_custom_call.1} parent=39 // pred_fallthru
          _
        %v445 = vld [vmem:[#allocation2] sm:$0xff]
        %v446 = vld [vmem:[#allocation2 + $0x8] sm:$0xff]
        %v447 = vld [vmem:[#allocation2 + $0x10] sm:$0xff]
        %v448 = vld [vmem:[#allocation2 + $0x18] sm:$0xff]
        %v449 = vld [vmem:[#allocation2 + $0x20] sm:$0xff]
        %v450 = vld [vmem:[#allocation2 + $0x28] sm:$0xff]
        %v451 = vld [vmem:[#allocation2 + $0x30] sm:$0xff]
        %v452 = vld [vmem:[#allocation2 + $0x38] sm:$0xff]
        %v453 = vld [vmem:[#allocation2 + $0x40] sm:$0xff]
        %v454 = vld [vmem:[#allocation2 + $0x48] sm:$0xff]
        %v455 = vld [vmem:[#allocation2 + $0x50] sm:$0xff]
        %v456 = vld [vmem:[#allocation2 + $0x58] sm:$0xff]
        %v457 = vld [vmem:[#allocation2 + $0x60] sm:$0xff]
        %v458 = vld [vmem:[#allocation2 + $0x68] sm:$0xff]
        %v459 = vld [vmem:[#allocation2 + $0x70] sm:$0xff]
        %v460 = vld [vmem:[#allocation2 + $0x78] sm:$0xff]
        %v461 = vld [vmem:[#allocation2 + $0x80] sm:$0xff]
        %v462 = vld [vmem:[#allocation2 + $0x88] sm:$0xff]
        %v463 = vld [vmem:[#allocation2 + $0x90] sm:$0xff]
        %v464 = vld [vmem:[#allocation2 + $0x98] sm:$0xff]
        %v465 = vld [vmem:[#allocation2 + $0xa0] sm:$0xff]
        %v466 = vld [vmem:[#allocation2 + $0xa8] sm:$0xff]
        %v467 = vld [vmem:[#allocation2 + $0xb0] sm:$0xff]
        %v468 = vld [vmem:[#allocation2 + $0xb8] sm:$0xff]
        %v469 = vld [vmem:[#allocation2 + $0xc0] sm:$0xff]
        %v470 = vld [vmem:[#allocation2 + $0xc8] sm:$0xff]
        %v471 = vld [vmem:[#allocation2 + $0xd0] sm:$0xff]
        %v472 = vld [vmem:[#allocation2 + $0xd8] sm:$0xff]
        %v473 = vld [vmem:[#allocation2 + $0xe0] sm:$0xff]
        %v474 = vld [vmem:[#allocation2 + $0xe8] sm:$0xff]
        %v475 = vld [vmem:[#allocation2 + $0xf0] sm:$0xff]
        %v476 = vld [vmem:[#allocation2 + $0xf8] sm:$0xff]
        %v477 = vld [vmem:[%s332] sm:$0xff]
        %v478 = vld [vmem:[%s332 + $0x8] sm:$0xff]
        %v479 = vld [vmem:[%s332 + $0x10] sm:$0xff]
        %v480 = vld [vmem:[%s332 + $0x18] sm:$0xff]
        %v481 = vld [vmem:[%s332 + $0x20] sm:$0xff]
        %v482 = vld [vmem:[%s332 + $0x28] sm:$0xff]
        %v483 = vld [vmem:[%s332 + $0x30] sm:$0xff]
        %v484 = vld [vmem:[%s332 + $0x38] sm:$0xff]
        %v485 = vld [vmem:[%s332 + $0x40] sm:$0xff]
        %v486 = vld [vmem:[%s332 + $0x48] sm:$0xff]
        %v487 = vld [vmem:[%s332 + $0x50] sm:$0xff]
        %v488 = vld [vmem:[%s332 + $0x58] sm:$0xff]
        %v489 = vld [vmem:[%s332 + $0x60] sm:$0xff]
        %v490 = vld [vmem:[%s332 + $0x68] sm:$0xff]
        %v491 = vld [vmem:[%s332 + $0x70] sm:$0xff]
        %v492 = vld [vmem:[%s332 + $0x78] sm:$0xff]
        %v493 = vld [vmem:[%s332 + $0x80] sm:$0xff]
        %v494 = vld [vmem:[%s332 + $0x88] sm:$0xff]
        %v495 = vld [vmem:[%s332 + $0x90] sm:$0xff]
        %v496 = vld [vmem:[%s332 + $0x98] sm:$0xff]
        %v497 = vld [vmem:[%s332 + $0xa0] sm:$0xff]
        %v498 = vld [vmem:[%s332 + $0xa8] sm:$0xff]
        %v499 = vld [vmem:[%s332 + $0xb0] sm:$0xff]
        %v500 = vld [vmem:[%s332 + $0xb8] sm:$0xff]
        %v501 = vld [vmem:[%s332 + $0xc0] sm:$0xff]
        %v502 = vld [vmem:[%s332 + $0xc8] sm:$0xff]
        %v503 = vld [vmem:[%s332 + $0xd0] sm:$0xff]
        %v504 = vld [vmem:[%s332 + $0xd8] sm:$0xff]
        %v505 = vld [vmem:[%s332 + $0xe0] sm:$0xff]
        %v506 = vld [vmem:[%s332 + $0xe8] sm:$0xff]
        %v507 = vld [vmem:[%s332 + $0xf0] sm:$0xff]
        %v508 = vld [vmem:[%s332 + $0xf8] sm:$0xff]
        %v509 = vld [vmem:[%s332 + $0x100] sm:$0xff]
        %v510 = vld [vmem:[%s332 + $0x108] sm:$0xff]
        %v511 = vld [vmem:[%s332 + $0x110] sm:$0xff]
        %v512 = vld [vmem:[%s332 + $0x118] sm:$0xff]
        %v513 = vld [vmem:[%s332 + $0x120] sm:$0xff]
        %v514 = vld [vmem:[%s332 + $0x128] sm:$0xff]
        %v515 = vld [vmem:[%s332 + $0x130] sm:$0xff]
        %v516 = vld [vmem:[%s332 + $0x138] sm:$0xff]
        %v517 = vld [vmem:[%s332 + $0x140] sm:$0xff]
        %v518 = vld [vmem:[%s332 + $0x148] sm:$0xff]
        %v519 = vld [vmem:[%s332 + $0x150] sm:$0xff]
        %v520 = vld [vmem:[%s332 + $0x158] sm:$0xff]
        %v521 = vld [vmem:[%s332 + $0x160] sm:$0xff]
        %v522 = vld [vmem:[%s332 + $0x168] sm:$0xff]
        %v523 = vld [vmem:[%s332 + $0x170] sm:$0xff]
        %v524 = vld [vmem:[%s332 + $0x178] sm:$0xff]
        %v525 = vld [vmem:[%s332 + $0x180] sm:$0xff]
        %v526 = vld [vmem:[%s332 + $0x188] sm:$0xff]
        %v527 = vld [vmem:[%s332 + $0x190] sm:$0xff]
        %v528 = vld [vmem:[%s332 + $0x198] sm:$0xff]
        %v529 = vld [vmem:[%s332 + $0x1a0] sm:$0xff]
        %v530 = vld [vmem:[%s332 + $0x1a8] sm:$0xff]
        %v531 = vld [vmem:[%s332 + $0x1b0] sm:$0xff]
        %v532 = vld [vmem:[%s332 + $0x1b8] sm:$0xff]
        %v533 = vld [vmem:[%s332 + $0x1c0] sm:$0xff]
        %v534 = vld [vmem:[%s332 + $0x1c8] sm:$0xff]
        %v535 = vld [vmem:[%s332 + $0x1d0] sm:$0xff]
        %v536 = vld [vmem:[%s332 + $0x1d8] sm:$0xff]
        %v537 = vld [vmem:[%s332 + $0x1e0] sm:$0xff]
        %v538 = vld [vmem:[%s332 + $0x1e8] sm:$0xff]
        %v539 = vld [vmem:[%s332 + $0x1f0] sm:$0xff]
        %v540 = vld [vmem:[%s332 + $0x1f8] sm:$0xff]
        %v541 = vld [vmem:[%s341] sm:$0xf]
        %v542 = vld [vmem:[%s341 + $0x4] sm:$0xf]
        %v543 = vld [vmem:[%s341 + $0x8] sm:$0xf]
        %v544 = vld [vmem:[%s341 + $0xc] sm:$0xf]
        %v545 = vld [vmem:[%s341 + $0x10] sm:$0xf]
        %v546 = vld [vmem:[%s341 + $0x14] sm:$0xf]
        %v547 = vld [vmem:[%s341 + $0x18] sm:$0xf]
        %v548 = vld [vmem:[%s341 + $0x1c] sm:$0xf]
        %v549 = vld [vmem:[%s341 + $0x20] sm:$0xf]
        %v550 = vld [vmem:[%s341 + $0x24] sm:$0xf]
        %v551 = vld [vmem:[%s341 + $0x28] sm:$0xf]
        %v552 = vld [vmem:[%s341 + $0x2c] sm:$0xf]
        %v553 = vld [vmem:[%s341 + $0x30] sm:$0xf]
        %v554 = vld [vmem:[%s341 + $0x34] sm:$0xf]
        %v555 = vld [vmem:[%s341 + $0x38] sm:$0xf]
        %v556 = vld [vmem:[%s341 + $0x3c] sm:$0xf]
        %v557 = vld [vmem:[%s341 + $0x40] sm:$0xf]
        %v558 = vld [vmem:[%s341 + $0x44] sm:$0xf]
        %v559 = vld [vmem:[%s341 + $0x48] sm:$0xf]
        %v560 = vld [vmem:[%s341 + $0x4c] sm:$0xf]
        %v561 = vld [vmem:[%s341 + $0x50] sm:$0xf]
        %v562 = vld [vmem:[%s341 + $0x54] sm:$0xf]
        %v563 = vld [vmem:[%s341 + $0x58] sm:$0xf]
        %v564 = vld [vmem:[%s341 + $0x5c] sm:$0xf]
        %v565 = vld [vmem:[%s341 + $0x60] sm:$0xf]
        %v566 = vld [vmem:[%s341 + $0x64] sm:$0xf]
        %v567 = vld [vmem:[%s341 + $0x68] sm:$0xf]
        %v568 = vld [vmem:[%s341 + $0x6c] sm:$0xf]
        %v569 = vld [vmem:[%s341 + $0x70] sm:$0xf]
        %v570 = vld [vmem:[%s341 + $0x74] sm:$0xf]
        %v571 = vld [vmem:[%s341 + $0x78] sm:$0xf]
        %v572 = vld [vmem:[%s341 + $0x7c] sm:$0xf]
        %v573 = vld [vmem:[%s341 + $0x80] sm:$0xf]
        %v574 = vld [vmem:[%s341 + $0x84] sm:$0xf]
        %v575 = vld [vmem:[%s341 + $0x88] sm:$0xf]
        %v576 = vld [vmem:[%s341 + $0x8c] sm:$0xf]
        %v577 = vld [vmem:[%s341 + $0x90] sm:$0xf]
        %v578 = vld [vmem:[%s341 + $0x94] sm:$0xf]
        %v579 = vld [vmem:[%s341 + $0x98] sm:$0xf]
        %v580 = vld [vmem:[%s341 + $0x9c] sm:$0xf]
        %v581 = vld [vmem:[%s341 + $0xa0] sm:$0xf]
        %v582 = vld [vmem:[%s341 + $0xa4] sm:$0xf]
        %v583 = vld [vmem:[%s341 + $0xa8] sm:$0xf]
        %v584 = vld [vmem:[%s341 + $0xac] sm:$0xf]
        %v585 = vld [vmem:[%s341 + $0xb0] sm:$0xf]
        %v586 = vld [vmem:[%s341 + $0xb4] sm:$0xf]
        %v587 = vld [vmem:[%s341 + $0xb8] sm:$0xf]
        %v588 = vld [vmem:[%s341 + $0xbc] sm:$0xf]
        %v589 = vld [vmem:[%s341 + $0xc0] sm:$0xf]
        %v590 = vld [vmem:[%s341 + $0xc4] sm:$0xf]
        %v591 = vld [vmem:[%s341 + $0xc8] sm:$0xf]
        %v592 = vld [vmem:[%s341 + $0xcc] sm:$0xf]
        %v593 = vld [vmem:[%s341 + $0xd0] sm:$0xf]
        %v594 = vld [vmem:[%s341 + $0xd4] sm:$0xf]
        %v595 = vld [vmem:[%s341 + $0xd8] sm:$0xf]
        %v596 = vld [vmem:[%s341 + $0xdc] sm:$0xf]
        %v597 = vld [vmem:[%s341 + $0xe0] sm:$0xf]
        %v598 = vld [vmem:[%s341 + $0xe4] sm:$0xf]
        %v599 = vld [vmem:[%s341 + $0xe8] sm:$0xf]
        %v600 = vld [vmem:[%s341 + $0xec] sm:$0xf]
        %v601 = vld [vmem:[%s341 + $0xf0] sm:$0xf]
        %v602 = vld [vmem:[%s341 + $0xf4] sm:$0xf]
        %v603 = vld [vmem:[%s341 + $0xf8] sm:$0xf]
        %v604 = vld [vmem:[%s341 + $0xfc] sm:$0xf]
        %v669 = vunpack.c.l.b16 %v477
        %v670 = vunpack.c.h.b16 %v477
        %v671 = vunpack.c.l.b16 %v478
        %v672 = vunpack.c.h.b16 %v478
        %v673 = vunpack.c.l.b16 %v479
        %v674 = vunpack.c.h.b16 %v479
        %v675 = vunpack.c.l.b16 %v480
        %v676 = vunpack.c.h.b16 %v480
        %v677 = vunpack.c.l.b16 %v481
        %v678 = vunpack.c.h.b16 %v481
        %v679 = vunpack.c.l.b16 %v482
        %v680 = vunpack.c.h.b16 %v482
        %v681 = vunpack.c.l.b16 %v483
        %v682 = vunpack.c.h.b16 %v483
        %v683 = vunpack.c.l.b16 %v484
        %v684 = vunpack.c.h.b16 %v484
        %v685 = vunpack.c.l.b16 %v485
        %v686 = vunpack.c.h.b16 %v485
        %v687 = vunpack.c.l.b16 %v486
        %v688 = vunpack.c.h.b16 %v486
        %v689 = vunpack.c.l.b16 %v487
        %v690 = vunpack.c.h.b16 %v487
        %v691 = vunpack.c.l.b16 %v488
        %v692 = vunpack.c.h.b16 %v488
        %v693 = vunpack.c.l.b16 %v489
        %v694 = vunpack.c.h.b16 %v489
        %v695 = vunpack.c.l.b16 %v490
        %v696 = vunpack.c.h.b16 %v490
        %v697 = vunpack.c.l.b16 %v491
        %v698 = vunpack.c.h.b16 %v491
        %v699 = vunpack.c.l.b16 %v492
        %v700 = vunpack.c.h.b16 %v492
        %v701 = vunpack.c.l.b16 %v493
        %v702 = vunpack.c.h.b16 %v493
        %v703 = vunpack.c.l.b16 %v494
        %v704 = vunpack.c.h.b16 %v494
        %v705 = vunpack.c.l.b16 %v495
        %v706 = vunpack.c.h.b16 %v495
        %v707 = vunpack.c.l.b16 %v496
        %v708 = vunpack.c.h.b16 %v496
        %v709 = vunpack.c.l.b16 %v497
        %v710 = vunpack.c.h.b16 %v497
        %v711 = vunpack.c.l.b16 %v498
        %v712 = vunpack.c.h.b16 %v498
        %v713 = vunpack.c.l.b16 %v499
        %v714 = vunpack.c.h.b16 %v499
        %v715 = vunpack.c.l.b16 %v500
        %v716 = vunpack.c.h.b16 %v500
        %v717 = vunpack.c.l.b16 %v501
        %v718 = vunpack.c.h.b16 %v501
        %v719 = vunpack.c.l.b16 %v502
        %v720 = vunpack.c.h.b16 %v502
        %v721 = vunpack.c.l.b16 %v503
        %v722 = vunpack.c.h.b16 %v503
        %v723 = vunpack.c.l.b16 %v504
        %v724 = vunpack.c.h.b16 %v504
        %v725 = vunpack.c.l.b16 %v505
        %v726 = vunpack.c.h.b16 %v505
        %v727 = vunpack.c.l.b16 %v506
        %v728 = vunpack.c.h.b16 %v506
        %v729 = vunpack.c.l.b16 %v507
        %v730 = vunpack.c.h.b16 %v507
        %v731 = vunpack.c.l.b16 %v508
        %v732 = vunpack.c.h.b16 %v508
        %v733 = vunpack.c.l.b16 %v509
        %v734 = vunpack.c.h.b16 %v509
        %v735 = vunpack.c.l.b16 %v510
        %v736 = vunpack.c.h.b16 %v510
        %v737 = vunpack.c.l.b16 %v511
        %v738 = vunpack.c.h.b16 %v511
        %v739 = vunpack.c.l.b16 %v512
        %v740 = vunpack.c.h.b16 %v512
        %v741 = vunpack.c.l.b16 %v513
        %v742 = vunpack.c.h.b16 %v513
        %v743 = vunpack.c.l.b16 %v514
        %v744 = vunpack.c.h.b16 %v514
        %v745 = vunpack.c.l.b16 %v515
        %v746 = vunpack.c.h.b16 %v515
        %v747 = vunpack.c.l.b16 %v516
        %v748 = vunpack.c.h.b16 %v516
        %v749 = vunpack.c.l.b16 %v517
        %v750 = vunpack.c.h.b16 %v517
        %v751 = vunpack.c.l.b16 %v518
        %v752 = vunpack.c.h.b16 %v518
        %v753 = vunpack.c.l.b16 %v519
        %v754 = vunpack.c.h.b16 %v519
        %v755 = vunpack.c.l.b16 %v520
        %v756 = vunpack.c.h.b16 %v520
        %v757 = vunpack.c.l.b16 %v521
        %v758 = vunpack.c.h.b16 %v521
        %v759 = vunpack.c.l.b16 %v522
        %v760 = vunpack.c.h.b16 %v522
        %v761 = vunpack.c.l.b16 %v523
        %v762 = vunpack.c.h.b16 %v523
        %v763 = vunpack.c.l.b16 %v524
        %v764 = vunpack.c.h.b16 %v524
        %v765 = vunpack.c.l.b16 %v525
        %v766 = vunpack.c.h.b16 %v525
        %v767 = vunpack.c.l.b16 %v526
        %v768 = vunpack.c.h.b16 %v526
        %v769 = vunpack.c.l.b16 %v527
        %v770 = vunpack.c.h.b16 %v527
        %v771 = vunpack.c.l.b16 %v528
        %v772 = vunpack.c.h.b16 %v528
        %v773 = vunpack.c.l.b16 %v529
        %v774 = vunpack.c.h.b16 %v529
        %v775 = vunpack.c.l.b16 %v530
        %v776 = vunpack.c.h.b16 %v530
        %v777 = vunpack.c.l.b16 %v531
        %v778 = vunpack.c.h.b16 %v531
        %v779 = vunpack.c.l.b16 %v532
        %v780 = vunpack.c.h.b16 %v532
        %v781 = vunpack.c.l.b16 %v533
        %v782 = vunpack.c.h.b16 %v533
        %v783 = vunpack.c.l.b16 %v534
        %v784 = vunpack.c.h.b16 %v534
        %v785 = vunpack.c.l.b16 %v535
        %v786 = vunpack.c.h.b16 %v535
        %v787 = vunpack.c.l.b16 %v536
        %v788 = vunpack.c.h.b16 %v536
        %v789 = vunpack.c.l.b16 %v537
        %v790 = vunpack.c.h.b16 %v537
        %v791 = vunpack.c.l.b16 %v538
        %v792 = vunpack.c.h.b16 %v538
        %v793 = vunpack.c.l.b16 %v539
        %v794 = vunpack.c.h.b16 %v539
        %v795 = vunpack.c.l.b16 %v540
        %v796 = vunpack.c.h.b16 %v540
        %v797 = vpack.c.b16 %v673, %v669
        %v798 = vpack.c.b16 %v674, %v670
        %v799 = vpack.c.b16 %v675, %v671
        %v800 = vpack.c.b16 %v676, %v672
        %v801 = vpack.c.b16 %v681, %v677
        %v802 = vpack.c.b16 %v682, %v678
        %v803 = vpack.c.b16 %v683, %v679
        %v804 = vpack.c.b16 %v684, %v680
        %v805 = vpack.c.b16 %v689, %v685
        %v806 = vpack.c.b16 %v690, %v686
        %v807 = vpack.c.b16 %v691, %v687
        %v808 = vpack.c.b16 %v692, %v688
        %v809 = vpack.c.b16 %v697, %v693
        %v810 = vpack.c.b16 %v698, %v694
        %v811 = vpack.c.b16 %v699, %v695
        %v812 = vpack.c.b16 %v700, %v696
        %v813 = vpack.c.b16 %v705, %v701
        %v814 = vpack.c.b16 %v706, %v702
        %v815 = vpack.c.b16 %v707, %v703
        %v816 = vpack.c.b16 %v708, %v704
        %v817 = vpack.c.b16 %v713, %v709
        %v818 = vpack.c.b16 %v714, %v710
        %v819 = vpack.c.b16 %v715, %v711
        %v820 = vpack.c.b16 %v716, %v712
        %v821 = vpack.c.b16 %v721, %v717
        %v822 = vpack.c.b16 %v722, %v718
        %v823 = vpack.c.b16 %v723, %v719
        %v824 = vpack.c.b16 %v724, %v720
        %v825 = vpack.c.b16 %v729, %v725
        %v826 = vpack.c.b16 %v730, %v726
        %v827 = vpack.c.b16 %v731, %v727
        %v828 = vpack.c.b16 %v732, %v728
        %v829 = vpack.c.b16 %v737, %v733
        %v830 = vpack.c.b16 %v738, %v734
        %v831 = vpack.c.b16 %v739, %v735
        %v832 = vpack.c.b16 %v740, %v736
        %v833 = vpack.c.b16 %v745, %v741
        %v834 = vpack.c.b16 %v746, %v742
        %v835 = vpack.c.b16 %v747, %v743
        %v836 = vpack.c.b16 %v748, %v744
        %v837 = vpack.c.b16 %v753, %v749
        %v838 = vpack.c.b16 %v754, %v750
        %v839 = vpack.c.b16 %v755, %v751
        %v840 = vpack.c.b16 %v756, %v752
        %v841 = vpack.c.b16 %v761, %v757
        %v842 = vpack.c.b16 %v762, %v758
        %v843 = vpack.c.b16 %v763, %v759
        %v844 = vpack.c.b16 %v764, %v760
        %v845 = vpack.c.b16 %v769, %v765
        %v846 = vpack.c.b16 %v770, %v766
        %v847 = vpack.c.b16 %v771, %v767
        %v848 = vpack.c.b16 %v772, %v768
        %v849 = vpack.c.b16 %v777, %v773
        %v850 = vpack.c.b16 %v778, %v774
        %v851 = vpack.c.b16 %v779, %v775
        %v852 = vpack.c.b16 %v780, %v776
        %v853 = vpack.c.b16 %v785, %v781
        %v854 = vpack.c.b16 %v786, %v782
        %v855 = vpack.c.b16 %v787, %v783
        %v856 = vpack.c.b16 %v788, %v784
        %v857 = vpack.c.b16 %v793, %v789
        %v858 = vpack.c.b16 %v794, %v790
        %v859 = vpack.c.b16 %v795, %v791
        %v860 = vpack.c.b16 %v796, %v792
        %v989 = vunpack.c.l.b16 %v541
        %v990 = vunpack.c.l.b16 %v542
        %v991 = vunpack.c.l.b16 %v543
        %v992 = vunpack.c.l.b16 %v544
        %v993 = vunpack.c.l.b16 %v545
        %v994 = vunpack.c.l.b16 %v546
        %v995 = vunpack.c.l.b16 %v547
        %v996 = vunpack.c.l.b16 %v548
        %v997 = vunpack.c.l.b16 %v549
        %v998 = vunpack.c.l.b16 %v550
        %v999 = vunpack.c.l.b16 %v551
        %v1000 = vunpack.c.l.b16 %v552
        %v1001 = vunpack.c.l.b16 %v553
        %v1002 = vunpack.c.l.b16 %v554
        %v1003 = vunpack.c.l.b16 %v555
        %v1004 = vunpack.c.l.b16 %v556
        %v1005 = vunpack.c.l.b16 %v557
        %v1006 = vunpack.c.l.b16 %v558
        %v1007 = vunpack.c.l.b16 %v559
        %v1008 = vunpack.c.l.b16 %v560
        %v1009 = vunpack.c.l.b16 %v561
        %v1010 = vunpack.c.l.b16 %v562
        %v1011 = vunpack.c.l.b16 %v563
        %v1012 = vunpack.c.l.b16 %v564
        %v1013 = vunpack.c.l.b16 %v565
        %v1014 = vunpack.c.l.b16 %v566
        %v1015 = vunpack.c.l.b16 %v567
        %v1016 = vunpack.c.l.b16 %v568
        %v1017 = vunpack.c.l.b16 %v569
        %v1018 = vunpack.c.l.b16 %v570
        %v1019 = vunpack.c.l.b16 %v571
        %v1020 = vunpack.c.l.b16 %v572
        %v1021 = vunpack.c.l.b16 %v573
        %v1022 = vunpack.c.l.b16 %v574
        %v1023 = vunpack.c.l.b16 %v575
        %v1024 = vunpack.c.l.b16 %v576
        %v1025 = vunpack.c.l.b16 %v577
        %v1026 = vunpack.c.l.b16 %v578
        %v1027 = vunpack.c.l.b16 %v579
        %v1028 = vunpack.c.l.b16 %v580
        %v1029 = vunpack.c.l.b16 %v581
        %v1030 = vunpack.c.l.b16 %v582
        %v1031 = vunpack.c.l.b16 %v583
        %v1032 = vunpack.c.l.b16 %v584
        %v1033 = vunpack.c.l.b16 %v585
        %v1034 = vunpack.c.l.b16 %v586
        %v1035 = vunpack.c.l.b16 %v587
        %v1036 = vunpack.c.l.b16 %v588
        %v1037 = vunpack.c.l.b16 %v589
        %v1038 = vunpack.c.l.b16 %v590
        %v1039 = vunpack.c.l.b16 %v591
        %v1040 = vunpack.c.l.b16 %v592
        %v1041 = vunpack.c.l.b16 %v593
        %v1042 = vunpack.c.l.b16 %v594
        %v1043 = vunpack.c.l.b16 %v595
        %v1044 = vunpack.c.l.b16 %v596
        %v1045 = vunpack.c.l.b16 %v597
        %v1046 = vunpack.c.l.b16 %v598
        %v1047 = vunpack.c.l.b16 %v599
        %v1048 = vunpack.c.l.b16 %v600
        %v1049 = vunpack.c.l.b16 %v601
        %v1050 = vunpack.c.l.b16 %v602
        %v1051 = vunpack.c.l.b16 %v603
        %v1052 = vunpack.c.l.b16 %v604
        %v1053 = vpack.c.b16 %v990, %v989
        %v1054 = vpack.c.b16 %v992, %v991
        %v1055 = vpack.c.b16 %v994, %v993
        %v1056 = vpack.c.b16 %v996, %v995
        %v1057 = vpack.c.b16 %v998, %v997
        %v1058 = vpack.c.b16 %v1000, %v999
        %v1059 = vpack.c.b16 %v1002, %v1001
        %v1060 = vpack.c.b16 %v1004, %v1003
        %v1061 = vpack.c.b16 %v1006, %v1005
        %v1062 = vpack.c.b16 %v1008, %v1007
        %v1063 = vpack.c.b16 %v1010, %v1009
        %v1064 = vpack.c.b16 %v1012, %v1011
        %v1065 = vpack.c.b16 %v1014, %v1013
        %v1066 = vpack.c.b16 %v1016, %v1015
        %v1067 = vpack.c.b16 %v1018, %v1017
        %v1068 = vpack.c.b16 %v1020, %v1019
        %v1069 = vpack.c.b16 %v1022, %v1021
        %v1070 = vpack.c.b16 %v1024, %v1023
        %v1071 = vpack.c.b16 %v1026, %v1025
        %v1072 = vpack.c.b16 %v1028, %v1027
        %v1073 = vpack.c.b16 %v1030, %v1029
        %v1074 = vpack.c.b16 %v1032, %v1031
        %v1075 = vpack.c.b16 %v1034, %v1033
        %v1076 = vpack.c.b16 %v1036, %v1035
        %v1077 = vpack.c.b16 %v1038, %v1037
        %v1078 = vpack.c.b16 %v1040, %v1039
        %v1079 = vpack.c.b16 %v1042, %v1041
        %v1080 = vpack.c.b16 %v1044, %v1043
        %v1081 = vpack.c.b16 %v1046, %v1045
        %v1082 = vpack.c.b16 %v1048, %v1047
        %v1083 = vpack.c.b16 %v1050, %v1049
        %v1084 = vpack.c.b16 %v1052, %v1051
        %1117 = vmatprep.subr.bf16.mxu0 0
        %1118 = vmatpush1.bf16.msra.mxu0 %v1053
        %1119 = vmatprep.subr.bf16.mxu0 0
        %1120 = vmatpush1.bf16.msra.mxu0 %v1054
        %1121 = vmatprep.subr.bf16.mxu0 0
        %1122 = vmatpush1.bf16.msra.mxu0 %v1055
        %1123 = vmatprep.subr.bf16.mxu0 0
        %1124 = vmatpush1.bf16.msra.mxu0 %v1056
        %1125 = vmatprep.subr.bf16.mxu0 0
        %1126 = vmatpush1.bf16.msra.mxu0 %v1057
        %1127 = vmatprep.subr.bf16.mxu0 0
        %1128 = vmatpush1.bf16.msra.mxu0 %v1058
        %1129 = vmatprep.subr.bf16.mxu0 0
        %1130 = vmatpush1.bf16.msra.mxu0 %v1059
        %1131 = vmatprep.subr.bf16.mxu0 0
        %1132 = vmatpush1.bf16.msra.mxu0 %v1060
        %1133 = vmatprep.subr.bf16.mxu0 0
        %1134 = vmatpush1.bf16.msra.mxu0 %v1061
        %1135 = vmatprep.subr.bf16.mxu0 0
        %1136 = vmatpush1.bf16.msra.mxu0 %v1062
        %1137 = vmatprep.subr.bf16.mxu0 0
        %1138 = vmatpush1.bf16.msra.mxu0 %v1063
        %1139 = vmatprep.subr.bf16.mxu0 0
        %1140 = vmatpush1.bf16.msra.mxu0 %v1064
        %1141 = vmatprep.subr.bf16.mxu0 0
        %1142 = vmatpush1.bf16.msra.mxu0 %v1065
        %1143 = vmatprep.subr.bf16.mxu0 0
        %1144 = vmatpush1.bf16.msra.mxu0 %v1066
        %1145 = vmatprep.subr.bf16.mxu0 0
        %1146 = vmatpush1.bf16.msra.mxu0 %v1067
        %1147 = vmatprep.subr.bf16.mxu0 0
        %1148 = vmatpush1.bf16.msra.mxu0 %v1068
        %1149 = vmatprep.mubr.bf16.mxu0 %v798
        %1150 = vmatmul.mubr.bf16.gmra.mrb[0].mxu0 %v797
        %v1151 = vpop.f32.mrb[0].mxu0
        %v1152 = vadd.f32 0.0, %v1151
        %v1153 = vpop.f32.mrb[0].mxu0
        %v1154 = vpop.f32.mrb[0].mxu0
        %v1155 = vadd.f32 0.0, %v1154
        %v1156 = vpop.f32.mrb[0].mxu0
        %1157 = vmatprep.mubr.bf16.mxu0 %v802
        %1158 = vmatmul.mubr.bf16.gmra.mrb[0].mxu0 %v801
        %v1159 = vpop.f32.mrb[0].mxu0
        %v1160 = vadd.f32 0.0, %v1159
        %v1161 = vpop.f32.mrb[0].mxu0
        %v1162 = vpop.f32.mrb[0].mxu0
        %v1163 = vadd.f32 0.0, %v1162
        %v1164 = vpop.f32.mrb[0].mxu0
        %1165 = vmatprep.mubr.bf16.mxu0 %v806
        %1166 = vmatmul.mubr.bf16.gmra.mrb[0].mxu0 %v805
        %v1167 = vpop.f32.mrb[0].mxu0
        %v1168 = vadd.f32 0.0, %v1167
        %v1169 = vpop.f32.mrb[0].mxu0
        %v1170 = vpop.f32.mrb[0].mxu0
        %v1171 = vadd.f32 0.0, %v1170
        %v1172 = vpop.f32.mrb[0].mxu0
        %1173 = vmatprep.mubr.bf16.mxu0 %v810
        %1174 = vmatmul.mubr.bf16.gmra.mrb[0].mxu0 %v809
        %v1175 = vpop.f32.mrb[0].mxu0
        %v1176 = vadd.f32 0.0, %v1175
        %v1177 = vpop.f32.mrb[0].mxu0
        %v1178 = vpop.f32.mrb[0].mxu0
        %v1179 = vadd.f32 0.0, %v1178
        %v1180 = vpop.f32.mrb[0].mxu0
        %1181 = vmatprep.mubr.bf16.mxu0 %v814
        %1182 = vmatmul.mubr.bf16.gmra.mrb[0].mxu0 %v813
        %v1183 = vpop.f32.mrb[0].mxu0
        %v1184 = vadd.f32 0.0, %v1183
        %v1185 = vpop.f32.mrb[0].mxu0
        %v1186 = vpop.f32.mrb[0].mxu0
        %v1187 = vadd.f32 0.0, %v1186
        %v1188 = vpop.f32.mrb[0].mxu0
        %1189 = vmatprep.mubr.bf16.mxu0 %v818
        %1190 = vmatmul.mubr.bf16.gmra.mrb[0].mxu0 %v817
        %v1191 = vpop.f32.mrb[0].mxu0
        %v1192 = vadd.f32 0.0, %v1191
        %v1193 = vpop.f32.mrb[0].mxu0
        %v1194 = vpop.f32.mrb[0].mxu0
        %v1195 = vadd.f32 0.0, %v1194
        %v1196 = vpop.f32.mrb[0].mxu0
        %1197 = vmatprep.mubr.bf16.mxu0 %v822
        %1198 = vmatmul.mubr.bf16.gmra.mrb[0].mxu0 %v821
        %v1199 = vpop.f32.mrb[0].mxu0
        %v1200 = vadd.f32 0.0, %v1199
        %v1201 = vpop.f32.mrb[0].mxu0
        %v1202 = vpop.f32.mrb[0].mxu0
        %v1203 = vadd.f32 0.0, %v1202
        %v1204 = vpop.f32.mrb[0].mxu0
        %1205 = vmatprep.mubr.bf16.mxu0 %v826
        %1206 = vmatmul.mubr.bf16.gmra.mrb[0].mxu0 %v825
        %v1207 = vpop.f32.mrb[0].mxu0
        %v1208 = vadd.f32 0.0, %v1207
        %v1209 = vpop.f32.mrb[0].mxu0
        %v1210 = vpop.f32.mrb[0].mxu0
        %v1211 = vadd.f32 0.0, %v1210
        %v1212 = vpop.f32.mrb[0].mxu0
        %1213 = vmatprep.mubr.bf16.mxu0 %v830
        %1214 = vmatmul.mubr.bf16.gmra.mrb[0].mxu0 %v829
        %v1215 = vpop.f32.mrb[0].mxu0
        %v1216 = vadd.f32 0.0, %v1215
        %v1217 = vpop.f32.mrb[0].mxu0
        %v1218 = vpop.f32.mrb[0].mxu0
        %v1219 = vadd.f32 0.0, %v1218
        %v1220 = vpop.f32.mrb[0].mxu0
        %1221 = vmatprep.mubr.bf16.mxu0 %v834
        %1222 = vmatmul.mubr.bf16.gmra.mrb[0].mxu0 %v833
        %v1223 = vpop.f32.mrb[0].mxu0
        %v1224 = vadd.f32 0.0, %v1223
        %v1225 = vpop.f32.mrb[0].mxu0
        %v1226 = vpop.f32.mrb[0].mxu0
        %v1227 = vadd.f32 0.0, %v1226
        %v1228 = vpop.f32.mrb[0].mxu0
        %1229 = vmatprep.mubr.bf16.mxu0 %v838
        %1230 = vmatmul.mubr.bf16.gmra.mrb[0].mxu0 %v837
        %v1231 = vpop.f32.mrb[0].mxu0
        %v1232 = vadd.f32 0.0, %v1231
        %v1233 = vpop.f32.mrb[0].mxu0
        %v1234 = vpop.f32.mrb[0].mxu0
        %v1235 = vadd.f32 0.0, %v1234
        %v1236 = vpop.f32.mrb[0].mxu0
        %1237 = vmatprep.mubr.bf16.mxu0 %v842
        %1238 = vmatmul.mubr.bf16.gmra.mrb[0].mxu0 %v841
        %v1239 = vpop.f32.mrb[0].mxu0
        %v1240 = vadd.f32 0.0, %v1239
        %v1241 = vpop.f32.mrb[0].mxu0
        %v1242 = vpop.f32.mrb[0].mxu0
        %v1243 = vadd.f32 0.0, %v1242
        %v1244 = vpop.f32.mrb[0].mxu0
        %1245 = vmatprep.mubr.bf16.mxu0 %v846
        %1246 = vmatmul.mubr.bf16.gmra.mrb[0].mxu0 %v845
        %v1247 = vpop.f32.mrb[0].mxu0
        %v1248 = vadd.f32 0.0, %v1247
        %v1249 = vpop.f32.mrb[0].mxu0
        %v1250 = vpop.f32.mrb[0].mxu0
        %v1251 = vadd.f32 0.0, %v1250
        %v1252 = vpop.f32.mrb[0].mxu0
        %1253 = vmatprep.mubr.bf16.mxu0 %v850
        %1254 = vmatmul.mubr.bf16.gmra.mrb[0].mxu0 %v849
        %v1255 = vpop.f32.mrb[0].mxu0
        %v1256 = vadd.f32 0.0, %v1255
        %v1257 = vpop.f32.mrb[0].mxu0
        %v1258 = vpop.f32.mrb[0].mxu0
        %v1259 = vadd.f32 0.0, %v1258
        %v1260 = vpop.f32.mrb[0].mxu0
        %1261 = vmatprep.mubr.bf16.mxu0 %v854
        %1262 = vmatmul.mubr.bf16.gmra.mrb[0].mxu0 %v853
        %v1263 = vpop.f32.mrb[0].mxu0
        %v1264 = vadd.f32 0.0, %v1263
        %v1265 = vpop.f32.mrb[0].mxu0
        %v1266 = vpop.f32.mrb[0].mxu0
        %v1267 = vadd.f32 0.0, %v1266
        %v1268 = vpop.f32.mrb[0].mxu0
        %1269 = vmatprep.mubr.bf16.mxu0 %v858
        %1270 = vmatmul.mubr.bf16.gmra.mrb[0].mxu0 %v857
        %v1271 = vpop.f32.mrb[0].mxu0
        %v1272 = vadd.f32 0.0, %v1271
        %v1273 = vpop.f32.mrb[0].mxu0
        %v1274 = vpop.f32.mrb[0].mxu0
        %v1275 = vadd.f32 0.0, %v1274
        %v1276 = vpop.f32.mrb[0].mxu0
        %1277 = vdwg.mxu0
        %1278 = vmatprep.subr.bf16.mxu0 0
        %1279 = vmatpush1.bf16.msra.mxu0 %v1069
        %1280 = vmatprep.subr.bf16.mxu0 0
        %1281 = vmatpush1.bf16.msra.mxu0 %v1070
        %1282 = vmatprep.subr.bf16.mxu0 0
        %1283 = vmatpush1.bf16.msra.mxu0 %v1071
        %1284 = vmatprep.subr.bf16.mxu0 0
        %1285 = vmatpush1.bf16.msra.mxu0 %v1072
        %1286 = vmatprep.subr.bf16.mxu0 0
        %1287 = vmatpush1.bf16.msra.mxu0 %v1073
        %1288 = vmatprep.subr.bf16.mxu0 0
        %1289 = vmatpush1.bf16.msra.mxu0 %v1074
        %1290 = vmatprep.subr.bf16.mxu0 0
        %1291 = vmatpush1.bf16.msra.mxu0 %v1075
        %1292 = vmatprep.subr.bf16.mxu0 0
        %1293 = vmatpush1.bf16.msra.mxu0 %v1076
        %1294 = vmatprep.subr.bf16.mxu0 0
        %1295 = vmatpush1.bf16.msra.mxu0 %v1077
        %1296 = vmatprep.subr.bf16.mxu0 0
        %1297 = vmatpush1.bf16.msra.mxu0 %v1078
        %1298 = vmatprep.subr.bf16.mxu0 0
        %1299 = vmatpush1.bf16.msra.mxu0 %v1079
        %1300 = vmatprep.subr.bf16.mxu0 0
        %1301 = vmatpush1.bf16.msra.mxu0 %v1080
        %1302 = vmatprep.subr.bf16.mxu0 0
        %1303 = vmatpush1.bf16.msra.mxu0 %v1081
        %1304 = vmatprep.subr.bf16.mxu0 0
        %1305 = vmatpush1.bf16.msra.mxu0 %v1082
        %1306 = vmatprep.subr.bf16.mxu0 0
        %1307 = vmatpush1.bf16.msra.mxu0 %v1083
        %1308 = vmatprep.subr.bf16.mxu0 0
        %1309 = vmatpush1.bf16.msra.mxu0 %v1084
        %1310 = vmatprep.mubr.bf16.mxu0 %v800
        %1311 = vmatmul.mubr.bf16.gmra.mrb[0].mxu0 %v799
        %v1312 = vpop.f32.mrb[0].mxu0
        %v1313 = vadd.f32 %v1152, %v1312
        %v1314 = vpop.f32.mrb[0].mxu0
        %v1315 = vpop.f32.mrb[0].mxu0
        %v1316 = vadd.f32 %v1155, %v1315
        %v1317 = vpop.f32.mrb[0].mxu0
        %1318 = vmatprep.mubr.bf16.mxu0 %v804
        %1319 = vmatmul.mubr.bf16.gmra.mrb[0].mxu0 %v803
        %v1320 = vpop.f32.mrb[0].mxu0
        %v1321 = vadd.f32 %v1160, %v1320
        %v1322 = vpop.f32.mrb[0].mxu0
        %v1323 = vpop.f32.mrb[0].mxu0
        %v1324 = vadd.f32 %v1163, %v1323
        %v1325 = vpop.f32.mrb[0].mxu0
        %1326 = vmatprep.mubr.bf16.mxu0 %v808
        %1327 = vmatmul.mubr.bf16.gmra.mrb[0].mxu0 %v807
        %v1328 = vpop.f32.mrb[0].mxu0
        %v1329 = vadd.f32 %v1168, %v1328
        %v1330 = vpop.f32.mrb[0].mxu0
        %v1331 = vpop.f32.mrb[0].mxu0
        %v1332 = vadd.f32 %v1171, %v1331
        %v1333 = vpop.f32.mrb[0].mxu0
        %1334 = vmatprep.mubr.bf16.mxu0 %v812
        %1335 = vmatmul.mubr.bf16.gmra.mrb[0].mxu0 %v811
        %v1336 = vpop.f32.mrb[0].mxu0
        %v1337 = vadd.f32 %v1176, %v1336
        %v1338 = vpop.f32.mrb[0].mxu0
        %v1339 = vpop.f32.mrb[0].mxu0
        %v1340 = vadd.f32 %v1179, %v1339
        %v1341 = vpop.f32.mrb[0].mxu0
        %1342 = vmatprep.mubr.bf16.mxu0 %v816
        %1343 = vmatmul.mubr.bf16.gmra.mrb[0].mxu0 %v815
        %v1344 = vpop.f32.mrb[0].mxu0
        %v1345 = vadd.f32 %v1184, %v1344
        %v1346 = vpop.f32.mrb[0].mxu0
        %v1347 = vpop.f32.mrb[0].mxu0
        %v1348 = vadd.f32 %v1187, %v1347
        %v1349 = vpop.f32.mrb[0].mxu0
        %1350 = vmatprep.mubr.bf16.mxu0 %v820
        %1351 = vmatmul.mubr.bf16.gmra.mrb[0].mxu0 %v819
        %v1352 = vpop.f32.mrb[0].mxu0
        %v1353 = vadd.f32 %v1192, %v1352
        %v1354 = vpop.f32.mrb[0].mxu0
        %v1355 = vpop.f32.mrb[0].mxu0
        %v1356 = vadd.f32 %v1195, %v1355
        %v1357 = vpop.f32.mrb[0].mxu0
        %1358 = vmatprep.mubr.bf16.mxu0 %v824
        %1359 = vmatmul.mubr.bf16.gmra.mrb[0].mxu0 %v823
        %v1360 = vpop.f32.mrb[0].mxu0
        %v1361 = vadd.f32 %v1200, %v1360
        %v1362 = vpop.f32.mrb[0].mxu0
        %v1363 = vpop.f32.mrb[0].mxu0
        %v1364 = vadd.f32 %v1203, %v1363
        %v1365 = vpop.f32.mrb[0].mxu0
        %1366 = vmatprep.mubr.bf16.mxu0 %v828
        %1367 = vmatmul.mubr.bf16.gmra.mrb[0].mxu0 %v827
        %v1368 = vpop.f32.mrb[0].mxu0
        %v1369 = vadd.f32 %v1208, %v1368
        %v1370 = vpop.f32.mrb[0].mxu0
        %v1371 = vpop.f32.mrb[0].mxu0
        %v1372 = vadd.f32 %v1211, %v1371
        %v1373 = vpop.f32.mrb[0].mxu0
        %1374 = vmatprep.mubr.bf16.mxu0 %v832
        %1375 = vmatmul.mubr.bf16.gmra.mrb[0].mxu0 %v831
        %v1376 = vpop.f32.mrb[0].mxu0
        %v1377 = vadd.f32 %v1216, %v1376
        %v1378 = vpop.f32.mrb[0].mxu0
        %v1379 = vpop.f32.mrb[0].mxu0
        %v1380 = vadd.f32 %v1219, %v1379
        %v1381 = vpop.f32.mrb[0].mxu0
        %1382 = vmatprep.mubr.bf16.mxu0 %v836
        %1383 = vmatmul.mubr.bf16.gmra.mrb[0].mxu0 %v835
        %v1384 = vpop.f32.mrb[0].mxu0
        %v1385 = vadd.f32 %v1224, %v1384
        %v1386 = vpop.f32.mrb[0].mxu0
        %v1387 = vpop.f32.mrb[0].mxu0
        %v1388 = vadd.f32 %v1227, %v1387
        %v1389 = vpop.f32.mrb[0].mxu0
        %1390 = vmatprep.mubr.bf16.mxu0 %v840
        %1391 = vmatmul.mubr.bf16.gmra.mrb[0].mxu0 %v839
        %v1392 = vpop.f32.mrb[0].mxu0
        %v1393 = vadd.f32 %v1232, %v1392
        %v1394 = vpop.f32.mrb[0].mxu0
        %v1395 = vpop.f32.mrb[0].mxu0
        %v1396 = vadd.f32 %v1235, %v1395
        %v1397 = vpop.f32.mrb[0].mxu0
        %1398 = vmatprep.mubr.bf16.mxu0 %v844
        %1399 = vmatmul.mubr.bf16.gmra.mrb[0].mxu0 %v843
        %v1400 = vpop.f32.mrb[0].mxu0
        %v1401 = vadd.f32 %v1240, %v1400
        %v1402 = vpop.f32.mrb[0].mxu0
        %v1403 = vpop.f32.mrb[0].mxu0
        %v1404 = vadd.f32 %v1243, %v1403
        %v1405 = vpop.f32.mrb[0].mxu0
        %1406 = vmatprep.mubr.bf16.mxu0 %v848
        %1407 = vmatmul.mubr.bf16.gmra.mrb[0].mxu0 %v847
        %v1408 = vpop.f32.mrb[0].mxu0
        %v1409 = vadd.f32 %v1248, %v1408
        %v1410 = vpop.f32.mrb[0].mxu0
        %v1411 = vpop.f32.mrb[0].mxu0
        %v1412 = vadd.f32 %v1251, %v1411
        %v1413 = vpop.f32.mrb[0].mxu0
        %1414 = vmatprep.mubr.bf16.mxu0 %v852
        %1415 = vmatmul.mubr.bf16.gmra.mrb[0].mxu0 %v851
        %v1416 = vpop.f32.mrb[0].mxu0
        %v1417 = vadd.f32 %v1256, %v1416
        %v1418 = vpop.f32.mrb[0].mxu0
        %v1419 = vpop.f32.mrb[0].mxu0
        %v1420 = vadd.f32 %v1259, %v1419
        %v1421 = vpop.f32.mrb[0].mxu0
        %1422 = vmatprep.mubr.bf16.mxu0 %v856
        %1423 = vmatmul.mubr.bf16.gmra.mrb[0].mxu0 %v855
        %v1424 = vpop.f32.mrb[0].mxu0
        %v1425 = vadd.f32 %v1264, %v1424
        %v1426 = vpop.f32.mrb[0].mxu0
        %v1427 = vpop.f32.mrb[0].mxu0
        %v1428 = vadd.f32 %v1267, %v1427
        %v1429 = vpop.f32.mrb[0].mxu0
        %1430 = vmatprep.mubr.bf16.mxu0 %v860
        %1431 = vmatmul.mubr.bf16.gmra.mrb[0].mxu0 %v859
        %v1432 = vpop.f32.mrb[0].mxu0
        %v1433 = vadd.f32 %v1272, %v1432
        %v1434 = vpop.f32.mrb[0].mxu0
        %v1435 = vpop.f32.mrb[0].mxu0
        %v1436 = vadd.f32 %v1275, %v1435
        %v1437 = vpop.f32.mrb[0].mxu0
        %1438 = vdwg.mxu0
        %v1439 = vadd.f32 %v445, %v1313
        %v1440 = vadd.f32 %v446, %v1316
        %v1441 = vadd.f32 %v447, %v1321
        %v1442 = vadd.f32 %v448, %v1324
        %v1443 = vadd.f32 %v449, %v1329
        %v1444 = vadd.f32 %v450, %v1332
        %v1445 = vadd.f32 %v451, %v1337
        %v1446 = vadd.f32 %v452, %v1340
        %v1447 = vadd.f32 %v453, %v1345
        %v1448 = vadd.f32 %v454, %v1348
        %v1449 = vadd.f32 %v455, %v1353
        %v1450 = vadd.f32 %v456, %v1356
        %v1451 = vadd.f32 %v457, %v1361
        %v1452 = vadd.f32 %v458, %v1364
        %v1453 = vadd.f32 %v459, %v1369
        %v1454 = vadd.f32 %v460, %v1372
        %v1455 = vadd.f32 %v461, %v1377
        %v1456 = vadd.f32 %v462, %v1380
        %v1457 = vadd.f32 %v463, %v1385
        %v1458 = vadd.f32 %v464, %v1388
        %v1459 = vadd.f32 %v465, %v1393
        %v1460 = vadd.f32 %v466, %v1396
        %v1461 = vadd.f32 %v467, %v1401
        %v1462 = vadd.f32 %v468, %v1404
        %v1463 = vadd.f32 %v469, %v1409
        %v1464 = vadd.f32 %v470, %v1412
        %v1465 = vadd.f32 %v471, %v1417
        %v1466 = vadd.f32 %v472, %v1420
        %v1467 = vadd.f32 %v473, %v1425
        %v1468 = vadd.f32 %v474, %v1428
        %v1469 = vadd.f32 %v475, %v1433
        %v1470 = vadd.f32 %v476, %v1436
        %1471 = vst [vmem:[#allocation2] sm:$0xff] %v1439
        %1472 = vst [vmem:[#allocation2 + $0x8] sm:$0xff] %v1440
        %1473 = vst [vmem:[#allocation2 + $0x10] sm:$0xff] %v1441
        %1474 = vst [vmem:[#allocation2 + $0x18] sm:$0xff] %v1442
        %1475 = vst [vmem:[#allocation2 + $0x20] sm:$0xff] %v1443
        %1476 = vst [vmem:[#allocation2 + $0x28] sm:$0xff] %v1444
        %1477 = vst [vmem:[#allocation2 + $0x30] sm:$0xff] %v1445
        %1478 = vst [vmem:[#allocation2 + $0x38] sm:$0xff] %v1446
        %1479 = vst [vmem:[#allocation2 + $0x40] sm:$0xff] %v1447
        %1480 = vst [vmem:[#allocation2 + $0x48] sm:$0xff] %v1448
        %1481 = vst [vmem:[#allocation2 + $0x50] sm:$0xff] %v1449
        %1482 = vst [vmem:[#allocation2 + $0x58] sm:$0xff] %v1450
        %1483 = vst [vmem:[#allocation2 + $0x60] sm:$0xff] %v1451
        %1484 = vst [vmem:[#allocation2 + $0x68] sm:$0xff] %v1452
        %1485 = vst [vmem:[#allocation2 + $0x70] sm:$0xff] %v1453
        %1486 = vst [vmem:[#allocation2 + $0x78] sm:$0xff] %v1454
        %1487 = vst [vmem:[#allocation2 + $0x80] sm:$0xff] %v1455
        %1488 = vst [vmem:[#allocation2 + $0x88] sm:$0xff] %v1456
        %1489 = vst [vmem:[#allocation2 + $0x90] sm:$0xff] %v1457
        %1490 = vst [vmem:[#allocation2 + $0x98] sm:$0xff] %v1458
        %1491 = vst [vmem:[#allocation2 + $0xa0] sm:$0xff] %v1459
        %1492 = vst [vmem:[#allocation2 + $0xa8] sm:$0xff] %v1460
        %1493 = vst [vmem:[#allocation2 + $0xb0] sm:$0xff] %v1461
        %1494 = vst [vmem:[#allocation2 + $0xb8] sm:$0xff] %v1462
        %1495 = vst [vmem:[#allocation2 + $0xc0] sm:$0xff] %v1463
        %1496 = vst [vmem:[#allocation2 + $0xc8] sm:$0xff] %v1464
        %1497 = vst [vmem:[#allocation2 + $0xd0] sm:$0xff] %v1465
        %1498 = vst [vmem:[#allocation2 + $0xd8] sm:$0xff] %v1466
        %1499 = vst [vmem:[#allocation2 + $0xe0] sm:$0xff] %v1467
        %1500 = vst [vmem:[#allocation2 + $0xe8] sm:$0xff] %v1468
        %1501 = vst [vmem:[#allocation2 + $0xf0] sm:$0xff] %v1469
        %1502 = vst [vmem:[#allocation2 + $0xf8] sm:$0xff] %v1470
        %p1503 = scmp.eq.s32.totalorder %s36, 1
        // Predicated region
        $region65: #{tpu_custom_call.1} parent=39 // pred_check
          %p1504 = pneg %p1503
        $region66: #{tpu_custom_call.1} parent=39 // pred_check_branch
          %1506 = sbr.rel (%p1504) target = $region68
        $region67: #{tpu_custom_call.1} parent=39 // pred_region
          %v1507 = vld [vmem:[%s350] sm:$0xff]
          %v1508 = vld [vmem:[%s350 + $0x8] sm:$0xff]
          %v1509 = vld [vmem:[%s350 + $0x10] sm:$0xff]
          %v1510 = vld [vmem:[%s350 + $0x18] sm:$0xff]
          %v1511 = vld [vmem:[%s350 + $0x20] sm:$0xff]
          %v1512 = vld [vmem:[%s350 + $0x28] sm:$0xff]
          %v1513 = vld [vmem:[%s350 + $0x30] sm:$0xff]
          %v1514 = vld [vmem:[%s350 + $0x38] sm:$0xff]
          %v1515 = vld [vmem:[%s350 + $0x40] sm:$0xff]
          %v1516 = vld [vmem:[%s350 + $0x48] sm:$0xff]
          %v1517 = vld [vmem:[%s350 + $0x50] sm:$0xff]
          %v1518 = vld [vmem:[%s350 + $0x58] sm:$0xff]
          %v1519 = vld [vmem:[%s350 + $0x60] sm:$0xff]
          %v1520 = vld [vmem:[%s350 + $0x68] sm:$0xff]
          %v1521 = vld [vmem:[%s350 + $0x70] sm:$0xff]
          %v1522 = vld [vmem:[%s350 + $0x78] sm:$0xff]
          %v1523 = vld [vmem:[%s350 + $0x80] sm:$0xff]
          %v1524 = vld [vmem:[%s350 + $0x88] sm:$0xff]
          %v1525 = vld [vmem:[%s350 + $0x90] sm:$0xff]
          %v1526 = vld [vmem:[%s350 + $0x98] sm:$0xff]
          %v1527 = vld [vmem:[%s350 + $0xa0] sm:$0xff]
          %v1528 = vld [vmem:[%s350 + $0xa8] sm:$0xff]
          %v1529 = vld [vmem:[%s350 + $0xb0] sm:$0xff]
          %v1530 = vld [vmem:[%s350 + $0xb8] sm:$0xff]
          %v1531 = vld [vmem:[%s350 + $0xc0] sm:$0xff]
          %v1532 = vld [vmem:[%s350 + $0xc8] sm:$0xff]
          %v1533 = vld [vmem:[%s350 + $0xd0] sm:$0xff]
          %v1534 = vld [vmem:[%s350 + $0xd8] sm:$0xff]
          %v1535 = vld [vmem:[%s350 + $0xe0] sm:$0xff]
          %v1536 = vld [vmem:[%s350 + $0xe8] sm:$0xff]
          %v1537 = vld [vmem:[%s350 + $0xf0] sm:$0xff]
          %v1538 = vld [vmem:[%s350 + $0xf8] sm:$0xff]
          %v1539 = vld [vmem:[#allocation2] sm:$0xff]
          %v1540 = vld [vmem:[#allocation2 + $0x8] sm:$0xff]
          %v1541 = vld [vmem:[#allocation2 + $0x10] sm:$0xff]
          %v1542 = vld [vmem:[#allocation2 + $0x18] sm:$0xff]
          %v1543 = vld [vmem:[#allocation2 + $0x20] sm:$0xff]
          %v1544 = vld [vmem:[#allocation2 + $0x28] sm:$0xff]
          %v1545 = vld [vmem:[#allocation2 + $0x30] sm:$0xff]
          %v1546 = vld [vmem:[#allocation2 + $0x38] sm:$0xff]
          %v1547 = vld [vmem:[#allocation2 + $0x40] sm:$0xff]
          %v1548 = vld [vmem:[#allocation2 + $0x48] sm:$0xff]
          %v1549 = vld [vmem:[#allocation2 + $0x50] sm:$0xff]
          %v1550 = vld [vmem:[#allocation2 + $0x58] sm:$0xff]
          %v1551 = vld [vmem:[#allocation2 + $0x60] sm:$0xff]
          %v1552 = vld [vmem:[#allocation2 + $0x68] sm:$0xff]
          %v1553 = vld [vmem:[#allocation2 + $0x70] sm:$0xff]
          %v1554 = vld [vmem:[#allocation2 + $0x78] sm:$0xff]
          %v1555 = vld [vmem:[#allocation2 + $0x80] sm:$0xff]
          %v1556 = vld [vmem:[#allocation2 + $0x88] sm:$0xff]
          %v1557 = vld [vmem:[#allocation2 + $0x90] sm:$0xff]
          %v1558 = vld [vmem:[#allocation2 + $0x98] sm:$0xff]
          %v1559 = vld [vmem:[#allocation2 + $0xa0] sm:$0xff]
          %v1560 = vld [vmem:[#allocation2 + $0xa8] sm:$0xff]
          %v1561 = vld [vmem:[#allocation2 + $0xb0] sm:$0xff]
          %v1562 = vld [vmem:[#allocation2 + $0xb8] sm:$0xff]
          %v1563 = vld [vmem:[#allocation2 + $0xc0] sm:$0xff]
          %v1564 = vld [vmem:[#allocation2 + $0xc8] sm:$0xff]
          %v1565 = vld [vmem:[#allocation2 + $0xd0] sm:$0xff]
          %v1566 = vld [vmem:[#allocation2 + $0xd8] sm:$0xff]
          %v1567 = vld [vmem:[#allocation2 + $0xe0] sm:$0xff]
          %v1568 = vld [vmem:[#allocation2 + $0xe8] sm:$0xff]
          %v1569 = vld [vmem:[#allocation2 + $0xf0] sm:$0xff]
          %v1570 = vld [vmem:[#allocation2 + $0xf8] sm:$0xff]
          %v1571 = vadd.f32 %v1507, %v1539
          %v1572 = vadd.f32 %v1508, %v1540
          %v1573 = vadd.f32 %v1509, %v1541
          %v1574 = vadd.f32 %v1510, %v1542
          %v1575 = vadd.f32 %v1511, %v1543
          %v1576 = vadd.f32 %v1512, %v1544
          %v1577 = vadd.f32 %v1513, %v1545
          %v1578 = vadd.f32 %v1514, %v1546
          %v1579 = vadd.f32 %v1515, %v1547
          %v1580 = vadd.f32 %v1516, %v1548
          %v1581 = vadd.f32 %v1517, %v1549
          %v1582 = vadd.f32 %v1518, %v1550
          %v1583 = vadd.f32 %v1519, %v1551
          %v1584 = vadd.f32 %v1520, %v1552
          %v1585 = vadd.f32 %v1521, %v1553
          %v1586 = vadd.f32 %v1522, %v1554
          %v1587 = vadd.f32 %v1523, %v1555
          %v1588 = vadd.f32 %v1524, %v1556
          %v1589 = vadd.f32 %v1525, %v1557
          %v1590 = vadd.f32 %v1526, %v1558
          %v1591 = vadd.f32 %v1527, %v1559
          %v1592 = vadd.f32 %v1528, %v1560
          %v1593 = vadd.f32 %v1529, %v1561
          %v1594 = vadd.f32 %v1530, %v1562
          %v1595 = vadd.f32 %v1531, %v1563
          %v1596 = vadd.f32 %v1532, %v1564
          %v1597 = vadd.f32 %v1533, %v1565
          %v1598 = vadd.f32 %v1534, %v1566
          %v1599 = vadd.f32 %v1535, %v1567
          %v1600 = vadd.f32 %v1536, %v1568
          %v1601 = vadd.f32 %v1537, %v1569
          %v1602 = vadd.f32 %v1538, %v1570
          %v1603 = vld [vmem:[#allocation9] sm:$0xff]
          %v1604 = vld [vmem:[#allocation9 + $0x8] sm:$0xff]
          %v1605 = vld [vmem:[#allocation9 + $0x10] sm:$0xff]
          %v1606 = vld [vmem:[#allocation9 + $0x18] sm:$0xff]
          %v1607 = vld [vmem:[#allocation9 + $0x20] sm:$0xff]
          %v1608 = vld [vmem:[#allocation9 + $0x28] sm:$0xff]
          %v1609 = vld [vmem:[#allocation9 + $0x30] sm:$0xff]
          %v1610 = vld [vmem:[#allocation9 + $0x38] sm:$0xff]
          %v1611 = vld [vmem:[#allocation9 + $0x40] sm:$0xff]
          %v1612 = vld [vmem:[#allocation9 + $0x48] sm:$0xff]
          %v1613 = vld [vmem:[#allocation9 + $0x50] sm:$0xff]
          %v1614 = vld [vmem:[#allocation9 + $0x58] sm:$0xff]
          %v1615 = vld [vmem:[#allocation9 + $0x60] sm:$0xff]
          %v1616 = vld [vmem:[#allocation9 + $0x68] sm:$0xff]
          %v1617 = vld [vmem:[#allocation9 + $0x70] sm:$0xff]
          %v1618 = vld [vmem:[#allocation9 + $0x78] sm:$0xff]
          %v1619 = vld [vmem:[#allocation11] sm:$0x1]
          %v1621 = vlaneseq
          %v1622 = vshrl.u32 %v1621, 7
          %v1623 = vsub.s32 0, %v1622
          %v1624 = vrot.slane %v1619, %v1623
          %1626 = vmatprep.subr.mxu0 0.0
          %1627 = vmatpush1.msra.mxu0 %v1603
          %1628 = vmatprep.subr.mxu0 0.0
          %1629 = vmatpush1.msra.mxu0 %v1604
          %1630 = vmatprep.subr.mxu0 0.0
          %1631 = vmatpush1.msra.mxu0 %v1605
          %1632 = vmatprep.subr.mxu0 0.0
          %1633 = vmatpush1.msra.mxu0 %v1606
          %1634 = vmatprep.subr.mxu0 0.0
          %1635 = vmatpush1.msra.mxu0 %v1607
          %1636 = vmatprep.subr.mxu0 0.0
          %1637 = vmatpush1.msra.mxu0 %v1608
          %1638 = vmatprep.subr.mxu0 0.0
          %1639 = vmatpush1.msra.mxu0 %v1609
          %1640 = vmatprep.subr.mxu0 0.0
          %1641 = vmatpush1.msra.mxu0 %v1610
          %1642 = vmatprep.subr.mxu0 0.0
          %1643 = vmatpush1.msra.mxu0 %v1611
          %1644 = vmatprep.subr.mxu0 0.0
          %1645 = vmatpush1.msra.mxu0 %v1612
          %1646 = vmatprep.subr.mxu0 0.0
          %1647 = vmatpush1.msra.mxu0 %v1613
          %1648 = vmatprep.subr.mxu0 0.0
          %1649 = vmatpush1.msra.mxu0 %v1614
          %1650 = vmatprep.subr.mxu0 0.0
          %1651 = vmatpush1.msra.mxu0 %v1615
          %1652 = vmatprep.subr.mxu0 0.0
          %1653 = vmatpush1.msra.mxu0 %v1616
          %1654 = vmatprep.subr.mxu0 0.0
          %1655 = vmatpush1.msra.mxu0 %v1617
          %1656 = vmatprep.subr.mxu0 0.0
          %1657 = vmatpush1.msra.mxu0 %v1618
          %1658 = vmatprep.subr.mxu0 0.0
          %1659 = vmatpush1.msra.mxu0 0.0
          %1660 = vmatprep.subr.mxu0 0.0
          %1661 = vmatpush1.msra.mxu0 0.0
          %1662 = vmatprep.subr.mxu0 0.0
          %1663 = vmatpush1.msra.mxu0 0.0
          %1664 = vmatprep.subr.mxu0 0.0
          %1665 = vmatpush1.msra.mxu0 0.0
          %1666 = vmatprep.subr.mxu0 0.0
          %1667 = vmatpush1.msra.mxu0 0.0
          %1668 = vmatprep.subr.mxu0 0.0
          %1669 = vmatpush1.msra.mxu0 0.0
          %1670 = vmatprep.subr.mxu0 0.0
          %1671 = vmatpush1.msra.mxu0 0.0
          %1672 = vmatprep.subr.mxu0 0.0
          %1673 = vmatpush1.msra.mxu0 0.0
          %1674 = vmatprep.subr.mxu0 0.0
          %1675 = vmatpush1.msra.mxu0 0.0
          %1676 = vmatprep.subr.mxu0 0.0
          %1677 = vmatpush1.msra.mxu0 0.0
          %1678 = vmatprep.subr.mxu0 0.0
          %1679 = vmatpush1.msra.mxu0 0.0
          %1680 = vmatprep.subr.mxu0 0.0
          %1681 = vmatpush1.msra.mxu0 0.0
          %1682 = vmatprep.subr.mxu0 0.0
          %1683 = vmatpush1.msra.mxu0 0.0
          %1684 = vmatprep.subr.mxu0 0.0
          %1685 = vmatpush1.msra.mxu0 0.0
          %1686 = vmatprep.subr.mxu0 0.0
          %1687 = vmatpush1.msra.mxu0 0.0
          %1688 = vmatprep.subr.mxu0 0.0
          %1689 = vmatpush1.msra.mxu0 0.0
          %1690 = vmatprep.mubr.f32.mxu0 0.0
          %1691 = vmatmul.mubr.f32.gmra.mrb[0].mxu0 %v1571
          %v1692 = vpop.f32.mrb[0].mxu0
          %v1693 = vadd.f32 %v1624, %v1692
          %v1694 = vpop.f32.mrb[0].mxu0
          %1695 = vmatprep.mubr.f32.mxu0 0.0
          %1696 = vmatmul.mubr.f32.gmra.mrb[0].mxu0 %v1572
          %v1697 = vpop.f32.mrb[0].mxu0
          %v1698 = vadd.f32 %v1624, %v1697
          %v1699 = vpop.f32.mrb[0].mxu0
          %1700 = vmatprep.mubr.f32.mxu0 0.0
          %1701 = vmatmul.mubr.f32.gmra.mrb[0].mxu0 %v1573
          %v1702 = vpop.f32.mrb[0].mxu0
          %v1703 = vadd.f32 %v1624, %v1702
          %v1704 = vpop.f32.mrb[0].mxu0
          %1705 = vmatprep.mubr.f32.mxu0 0.0
          %1706 = vmatmul.mubr.f32.gmra.mrb[0].mxu0 %v1574
          %v1707 = vpop.f32.mrb[0].mxu0
          %v1708 = vadd.f32 %v1624, %v1707
          %v1709 = vpop.f32.mrb[0].mxu0
          %1710 = vmatprep.mubr.f32.mxu0 0.0
          %1711 = vmatmul.mubr.f32.gmra.mrb[0].mxu0 %v1575
          %v1712 = vpop.f32.mrb[0].mxu0
          %v1713 = vadd.f32 %v1624, %v1712
          %v1714 = vpop.f32.mrb[0].mxu0
          %1715 = vmatprep.mubr.f32.mxu0 0.0
          %1716 = vmatmul.mubr.f32.gmra.mrb[0].mxu0 %v1576
          %v1717 = vpop.f32.mrb[0].mxu0
          %v1718 = vadd.f32 %v1624, %v1717
          %v1719 = vpop.f32.mrb[0].mxu0
          %1720 = vmatprep.mubr.f32.mxu0 0.0
          %1721 = vmatmul.mubr.f32.gmra.mrb[0].mxu0 %v1577
          %v1722 = vpop.f32.mrb[0].mxu0
          %v1723 = vadd.f32 %v1624, %v1722
          %v1724 = vpop.f32.mrb[0].mxu0
          %1725 = vmatprep.mubr.f32.mxu0 0.0
          %1726 = vmatmul.mubr.f32.gmra.mrb[0].mxu0 %v1578
          %v1727 = vpop.f32.mrb[0].mxu0
          %v1728 = vadd.f32 %v1624, %v1727
          %v1729 = vpop.f32.mrb[0].mxu0
          %1730 = vmatprep.mubr.f32.mxu0 0.0
          %1731 = vmatmul.mubr.f32.gmra.mrb[0].mxu0 %v1579
          %v1732 = vpop.f32.mrb[0].mxu0
          %v1733 = vadd.f32 %v1624, %v1732
          %v1734 = vpop.f32.mrb[0].mxu0
          %1735 = vmatprep.mubr.f32.mxu0 0.0
          %1736 = vmatmul.mubr.f32.gmra.mrb[0].mxu0 %v1580
          %v1737 = vpop.f32.mrb[0].mxu0
          %v1738 = vadd.f32 %v1624, %v1737
          %v1739 = vpop.f32.mrb[0].mxu0
          %1740 = vmatprep.mubr.f32.mxu0 0.0
          %1741 = vmatmul.mubr.f32.gmra.mrb[0].mxu0 %v1581
          %v1742 = vpop.f32.mrb[0].mxu0
          %v1743 = vadd.f32 %v1624, %v1742
          %v1744 = vpop.f32.mrb[0].mxu0
          %1745 = vmatprep.mubr.f32.mxu0 0.0
          %1746 = vmatmul.mubr.f32.gmra.mrb[0].mxu0 %v1582
          %v1747 = vpop.f32.mrb[0].mxu0
          %v1748 = vadd.f32 %v1624, %v1747
          %v1749 = vpop.f32.mrb[0].mxu0
          %1750 = vmatprep.mubr.f32.mxu0 0.0
          %1751 = vmatmul.mubr.f32.gmra.mrb[0].mxu0 %v1583
          %v1752 = vpop.f32.mrb[0].mxu0
          %v1753 = vadd.f32 %v1624, %v1752
          %v1754 = vpop.f32.mrb[0].mxu0
          %1755 = vmatprep.mubr.f32.mxu0 0.0
          %1756 = vmatmul.mubr.f32.gmra.mrb[0].mxu0 %v1584
          %v1757 = vpop.f32.mrb[0].mxu0
          %v1758 = vadd.f32 %v1624, %v1757
          %v1759 = vpop.f32.mrb[0].mxu0
          %1760 = vmatprep.mubr.f32.mxu0 0.0
          %1761 = vmatmul.mubr.f32.gmra.mrb[0].mxu0 %v1585
          %v1762 = vpop.f32.mrb[0].mxu0
          %v1763 = vadd.f32 %v1624, %v1762
          %v1764 = vpop.f32.mrb[0].mxu0
          %1765 = vmatprep.mubr.f32.mxu0 0.0
          %1766 = vmatmul.mubr.f32.gmra.mrb[0].mxu0 %v1586
          %v1767 = vpop.f32.mrb[0].mxu0
          %v1768 = vadd.f32 %v1624, %v1767
          %v1769 = vpop.f32.mrb[0].mxu0
          %1770 = vmatprep.mubr.f32.mxu0 0.0
          %1771 = vmatmul.mubr.f32.gmra.mrb[0].mxu0 %v1587
          %v1772 = vpop.f32.mrb[0].mxu0
          %v1773 = vadd.f32 %v1624, %v1772
          %v1774 = vpop.f32.mrb[0].mxu0
          %1775 = vmatprep.mubr.f32.mxu0 0.0
          %1776 = vmatmul.mubr.f32.gmra.mrb[0].mxu0 %v1588
          %v1777 = vpop.f32.mrb[0].mxu0
          %v1778 = vadd.f32 %v1624, %v1777
          %v1779 = vpop.f32.mrb[0].mxu0
          %1780 = vmatprep.mubr.f32.mxu0 0.0
          %1781 = vmatmul.mubr.f32.gmra.mrb[0].mxu0 %v1589
          %v1782 = vpop.f32.mrb[0].mxu0
          %v1783 = vadd.f32 %v1624, %v1782
          %v1784 = vpop.f32.mrb[0].mxu0
          %1785 = vmatprep.mubr.f32.mxu0 0.0
          %1786 = vmatmul.mubr.f32.gmra.mrb[0].mxu0 %v1590
          %v1787 = vpop.f32.mrb[0].mxu0
          %v1788 = vadd.f32 %v1624, %v1787
          %v1789 = vpop.f32.mrb[0].mxu0
          %1790 = vmatprep.mubr.f32.mxu0 0.0
          %1791 = vmatmul.mubr.f32.gmra.mrb[0].mxu0 %v1591
          %v1792 = vpop.f32.mrb[0].mxu0
          %v1793 = vadd.f32 %v1624, %v1792
          %v1794 = vpop.f32.mrb[0].mxu0
          %1795 = vmatprep.mubr.f32.mxu0 0.0
          %1796 = vmatmul.mubr.f32.gmra.mrb[0].mxu0 %v1592
          %v1797 = vpop.f32.mrb[0].mxu0
          %v1798 = vadd.f32 %v1624, %v1797
          %v1799 = vpop.f32.mrb[0].mxu0
          %1800 = vmatprep.mubr.f32.mxu0 0.0
          %1801 = vmatmul.mubr.f32.gmra.mrb[0].mxu0 %v1593
          %v1802 = vpop.f32.mrb[0].mxu0
          %v1803 = vadd.f32 %v1624, %v1802
          %v1804 = vpop.f32.mrb[0].mxu0
          %1805 = vmatprep.mubr.f32.mxu0 0.0
          %1806 = vmatmul.mubr.f32.gmra.mrb[0].mxu0 %v1594
          %v1807 = vpop.f32.mrb[0].mxu0
          %v1808 = vadd.f32 %v1624, %v1807
          %v1809 = vpop.f32.mrb[0].mxu0
          %1810 = vmatprep.mubr.f32.mxu0 0.0
          %1811 = vmatmul.mubr.f32.gmra.mrb[0].mxu0 %v1595
          %v1812 = vpop.f32.mrb[0].mxu0
          %v1813 = vadd.f32 %v1624, %v1812
          %v1814 = vpop.f32.mrb[0].mxu0
          %1815 = vmatprep.mubr.f32.mxu0 0.0
          %1816 = vmatmul.mubr.f32.gmra.mrb[0].mxu0 %v1596
          %v1817 = vpop.f32.mrb[0].mxu0
          %v1818 = vadd.f32 %v1624, %v1817
          %v1819 = vpop.f32.mrb[0].mxu0
          %1820 = vmatprep.mubr.f32.mxu0 0.0
          %1821 = vmatmul.mubr.f32.gmra.mrb[0].mxu0 %v1597
          %v1822 = vpop.f32.mrb[0].mxu0
          %v1823 = vadd.f32 %v1624, %v1822
          %v1824 = vpop.f32.mrb[0].mxu0
          %1825 = vmatprep.mubr.f32.mxu0 0.0
          %1826 = vmatmul.mubr.f32.gmra.mrb[0].mxu0 %v1598
          %v1827 = vpop.f32.mrb[0].mxu0
          %v1828 = vadd.f32 %v1624, %v1827
          %v1829 = vpop.f32.mrb[0].mxu0
          %1830 = vmatprep.mubr.f32.mxu0 0.0
          %1831 = vmatmul.mubr.f32.gmra.mrb[0].mxu0 %v1599
          %v1832 = vpop.f32.mrb[0].mxu0
          %v1833 = vadd.f32 %v1624, %v1832
          %v1834 = vpop.f32.mrb[0].mxu0
          %1835 = vmatprep.mubr.f32.mxu0 0.0
          %1836 = vmatmul.mubr.f32.gmra.mrb[0].mxu0 %v1600
          %v1837 = vpop.f32.mrb[0].mxu0
          %v1838 = vadd.f32 %v1624, %v1837
          %v1839 = vpop.f32.mrb[0].mxu0
          %1840 = vmatprep.mubr.f32.mxu0 0.0
          %1841 = vmatmul.mubr.f32.gmra.mrb[0].mxu0 %v1601
          %v1842 = vpop.f32.mrb[0].mxu0
          %v1843 = vadd.f32 %v1624, %v1842
          %v1844 = vpop.f32.mrb[0].mxu0
          %1845 = vmatprep.mubr.f32.mxu0 0.0
          %1846 = vmatmul.mubr.f32.gmra.mrb[0].mxu0 %v1602
          %v1847 = vpop.f32.mrb[0].mxu0
          %v1848 = vadd.f32 %v1624, %v1847
          %v1849 = vpop.f32.mrb[0].mxu0
          %1850 = vdwg.mxu0
          %v1851 = vmax.f32 %v1693, 0.0
          %v1852 = vmax.f32 %v1698, 0.0
          %v1853 = vmax.f32 %v1703, 0.0
          %v1854 = vmax.f32 %v1708, 0.0
          %v1855 = vmax.f32 %v1713, 0.0
          %v1856 = vmax.f32 %v1718, 0.0
          %v1857 = vmax.f32 %v1723, 0.0
          %v1858 = vmax.f32 %v1728, 0.0
          %v1859 = vmax.f32 %v1733, 0.0
          %v1860 = vmax.f32 %v1738, 0.0
          %v1861 = vmax.f32 %v1743, 0.0
          %v1862 = vmax.f32 %v1748, 0.0
          %v1863 = vmax.f32 %v1753, 0.0
          %v1864 = vmax.f32 %v1758, 0.0
          %v1865 = vmax.f32 %v1763, 0.0
          %v1866 = vmax.f32 %v1768, 0.0
          %v1867 = vmax.f32 %v1773, 0.0
          %v1868 = vmax.f32 %v1778, 0.0
          %v1869 = vmax.f32 %v1783, 0.0
          %v1870 = vmax.f32 %v1788, 0.0
          %v1871 = vmax.f32 %v1793, 0.0
          %v1872 = vmax.f32 %v1798, 0.0
          %v1873 = vmax.f32 %v1803, 0.0
          %v1874 = vmax.f32 %v1808, 0.0
          %v1875 = vmax.f32 %v1813, 0.0
          %v1876 = vmax.f32 %v1818, 0.0
          %v1877 = vmax.f32 %v1823, 0.0
          %v1878 = vmax.f32 %v1828, 0.0
          %v1879 = vmax.f32 %v1833, 0.0
          %v1880 = vmax.f32 %v1838, 0.0
          %v1881 = vmax.f32 %v1843, 0.0
          %v1882 = vmax.f32 %v1848, 0.0
          %1883 = vst [vmem:[%s394] sm:$0xff] %v1851
          %1884 = vst [vmem:[%s394 + $0x8] sm:$0xff] %v1852
          %1885 = vst [vmem:[%s394 + $0x10] sm:$0xff] %v1853
          %1886 = vst [vmem:[%s394 + $0x18] sm:$0xff] %v1854
          %1887 = vst [vmem:[%s394 + $0x20] sm:$0xff] %v1855
          %1888 = vst [vmem:[%s394 + $0x28] sm:$0xff] %v1856
          %1889 = vst [vmem:[%s394 + $0x30] sm:$0xff] %v1857
          %1890 = vst [vmem:[%s394 + $0x38] sm:$0xff] %v1858
          %1891 = vst [vmem:[%s394 + $0x40] sm:$0xff] %v1859
          %1892 = vst [vmem:[%s394 + $0x48] sm:$0xff] %v1860
          %1893 = vst [vmem:[%s394 + $0x50] sm:$0xff] %v1861
          %1894 = vst [vmem:[%s394 + $0x58] sm:$0xff] %v1862
          %1895 = vst [vmem:[%s394 + $0x60] sm:$0xff] %v1863
          %1896 = vst [vmem:[%s394 + $0x68] sm:$0xff] %v1864
          %1897 = vst [vmem:[%s394 + $0x70] sm:$0xff] %v1865
          %1898 = vst [vmem:[%s394 + $0x78] sm:$0xff] %v1866
          %1899 = vst [vmem:[%s394 + $0x80] sm:$0xff] %v1867
          %1900 = vst [vmem:[%s394 + $0x88] sm:$0xff] %v1868
          %1901 = vst [vmem:[%s394 + $0x90] sm:$0xff] %v1869
          %1902 = vst [vmem:[%s394 + $0x98] sm:$0xff] %v1870
          %1903 = vst [vmem:[%s394 + $0xa0] sm:$0xff] %v1871
          %1904 = vst [vmem:[%s394 + $0xa8] sm:$0xff] %v1872
          %1905 = vst [vmem:[%s394 + $0xb0] sm:$0xff] %v1873
          %1906 = vst [vmem:[%s394 + $0xb8] sm:$0xff] %v1874
          %1907 = vst [vmem:[%s394 + $0xc0] sm:$0xff] %v1875
          %1908 = vst [vmem:[%s394 + $0xc8] sm:$0xff] %v1876
          %1909 = vst [vmem:[%s394 + $0xd0] sm:$0xff] %v1877
          %1910 = vst [vmem:[%s394 + $0xd8] sm:$0xff] %v1878
          %1911 = vst [vmem:[%s394 + $0xe0] sm:$0xff] %v1879
          %1912 = vst [vmem:[%s394 + $0xe8] sm:$0xff] %v1880
          %1913 = vst [vmem:[%s394 + $0xf0] sm:$0xff] %v1881
          %1914 = vst [vmem:[%s394 + $0xf8] sm:$0xff] %v1882
          %v1915 = vpack.c.bf16 %v1852, %v1851
          %v1916 = vpack.c.bf16 %v1854, %v1853
          %v1917 = vpack.c.bf16 %v1856, %v1855
          %v1918 = vpack.c.bf16 %v1858, %v1857
          %v1919 = vpack.c.bf16 %v1860, %v1859
          %v1920 = vpack.c.bf16 %v1862, %v1861
          %v1921 = vpack.c.bf16 %v1864, %v1863
          %v1922 = vpack.c.bf16 %v1866, %v1865
          %v1923 = vpack.c.bf16 %v1868, %v1867
          %v1924 = vpack.c.bf16 %v1870, %v1869
          %v1925 = vpack.c.bf16 %v1872, %v1871
          %v1926 = vpack.c.bf16 %v1874, %v1873
          %v1927 = vpack.c.bf16 %v1876, %v1875
          %v1928 = vpack.c.bf16 %v1878, %v1877
          %v1929 = vpack.c.bf16 %v1880, %v1879
          %v1930 = vpack.c.bf16 %v1882, %v1881
          %v1947 = vunpack.c.l.b16 %v1915
          %v1948 = vunpack.c.h.b16 %v1915
          %v1949 = vunpack.c.l.b16 %v1916
          %v1950 = vunpack.c.h.b16 %v1916
          %v1951 = vunpack.c.l.b16 %v1917
          %v1952 = vunpack.c.h.b16 %v1917
          %v1953 = vunpack.c.l.b16 %v1918
          %v1954 = vunpack.c.h.b16 %v1918
          %v1955 = vunpack.c.l.b16 %v1919
          %v1956 = vunpack.c.h.b16 %v1919
          %v1957 = vunpack.c.l.b16 %v1920
          %v1958 = vunpack.c.h.b16 %v1920
          %v1959 = vunpack.c.l.b16 %v1921
          %v1960 = vunpack.c.h.b16 %v1921
          %v1961 = vunpack.c.l.b16 %v1922
          %v1962 = vunpack.c.h.b16 %v1922
          %v1963 = vunpack.c.l.b16 %v1923
          %v1964 = vunpack.c.h.b16 %v1923
          %v1965 = vunpack.c.l.b16 %v1924
          %v1966 = vunpack.c.h.b16 %v1924
          %v1967 = vunpack.c.l.b16 %v1925
          %v1968 = vunpack.c.h.b16 %v1925
          %v1969 = vunpack.c.l.b16 %v1926
          %v1970 = vunpack.c.h.b16 %v1926
          %v1971 = vunpack.c.l.b16 %v1927
          %v1972 = vunpack.c.h.b16 %v1927
          %v1973 = vunpack.c.l.b16 %v1928
          %v1974 = vunpack.c.h.b16 %v1928
          %v1975 = vunpack.c.l.b16 %v1929
          %v1976 = vunpack.c.h.b16 %v1929
          %v1977 = vunpack.c.l.b16 %v1930
          %v1978 = vunpack.c.h.b16 %v1930
          %v1979 = vpack.c.b16 %v1947, %v1947
          %v1980 = vpack.c.b16 %v1948, %v1948
          %v1981 = vpack.c.b16 %v1949, %v1949
          %v1982 = vpack.c.b16 %v1950, %v1950
          %v1983 = vpack.c.b16 %v1951, %v1951
          %v1984 = vpack.c.b16 %v1952, %v1952
          %v1985 = vpack.c.b16 %v1953, %v1953
          %v1986 = vpack.c.b16 %v1954, %v1954
          %v1987 = vpack.c.b16 %v1955, %v1955
          %v1988 = vpack.c.b16 %v1956, %v1956
          %v1989 = vpack.c.b16 %v1957, %v1957
          %v1990 = vpack.c.b16 %v1958, %v1958
          %v1991 = vpack.c.b16 %v1959, %v1959
          %v1992 = vpack.c.b16 %v1960, %v1960
          %v1993 = vpack.c.b16 %v1961, %v1961
          %v1994 = vpack.c.b16 %v1962, %v1962
          %v1995 = vpack.c.b16 %v1963, %v1963
          %v1996 = vpack.c.b16 %v1964, %v1964
          %v1997 = vpack.c.b16 %v1965, %v1965
          %v1998 = vpack.c.b16 %v1966, %v1966
          %v1999 = vpack.c.b16 %v1967, %v1967
          %v2000 = vpack.c.b16 %v1968, %v1968
          %v2001 = vpack.c.b16 %v1969, %v1969
          %v2002 = vpack.c.b16 %v1970, %v1970
          %v2003 = vpack.c.b16 %v1971, %v1971
          %v2004 = vpack.c.b16 %v1972, %v1972
          %v2005 = vpack.c.b16 %v1973, %v1973
          %v2006 = vpack.c.b16 %v1974, %v1974
          %v2007 = vpack.c.b16 %v1975, %v1975
          %v2008 = vpack.c.b16 %v1976, %v1976
          %v2009 = vpack.c.b16 %v1977, %v1977
          %v2010 = vpack.c.b16 %v1978, %v1978
          %2043 = vst [vmem:[%s401] sm:$0xf] %v1979
          %2044 = vst [vmem:[%s401 + $0x4] sm:$0xf] %v1980
          %2045 = vst [vmem:[%s401 + $0x8] sm:$0xf] %v1981
          %2046 = vst [vmem:[%s401 + $0xc] sm:$0xf] %v1982
          %2047 = vst [vmem:[%s401 + $0x10] sm:$0xf] %v1983
          %2048 = vst [vmem:[%s401 + $0x14] sm:$0xf] %v1984
          %2049 = vst [vmem:[%s401 + $0x18] sm:$0xf] %v1985
          %2050 = vst [vmem:[%s401 + $0x1c] sm:$0xf] %v1986
          %2051 = vst [vmem:[%s401 + $0x20] sm:$0xf] %v1987
          %2052 = vst [vmem:[%s401 + $0x24] sm:$0xf] %v1988
          %2053 = vst [vmem:[%s401 + $0x28] sm:$0xf] %v1989
          %2054 = vst [vmem:[%s401 + $0x2c] sm:$0xf] %v1990
          %2055 = vst [vmem:[%s401 + $0x30] sm:$0xf] %v1991
          %2056 = vst [vmem:[%s401 + $0x34] sm:$0xf] %v1992
          %2057 = vst [vmem:[%s401 + $0x38] sm:$0xf] %v1993
          %2058 = vst [vmem:[%s401 + $0x3c] sm:$0xf] %v1994
          %2059 = vst [vmem:[%s401 + $0x40] sm:$0xf] %v1995
          %2060 = vst [vmem:[%s401 + $0x44] sm:$0xf] %v1996
          %2061 = vst [vmem:[%s401 + $0x48] sm:$0xf] %v1997
          %2062 = vst [vmem:[%s401 + $0x4c] sm:$0xf] %v1998
          %2063 = vst [vmem:[%s401 + $0x50] sm:$0xf] %v1999
          %2064 = vst [vmem:[%s401 + $0x54] sm:$0xf] %v2000
          %2065 = vst [vmem:[%s401 + $0x58] sm:$0xf] %v2001
          %2066 = vst [vmem:[%s401 + $0x5c] sm:$0xf] %v2002
          %2067 = vst [vmem:[%s401 + $0x60] sm:$0xf] %v2003
          %2068 = vst [vmem:[%s401 + $0x64] sm:$0xf] %v2004
          %2069 = vst [vmem:[%s401 + $0x68] sm:$0xf] %v2005
          %2070 = vst [vmem:[%s401 + $0x6c] sm:$0xf] %v2006
          %2071 = vst [vmem:[%s401 + $0x70] sm:$0xf] %v2007
          %2072 = vst [vmem:[%s401 + $0x74] sm:$0xf] %v2008
          %2073 = vst [vmem:[%s401 + $0x78] sm:$0xf] %v2009
          %2074 = vst [vmem:[%s401 + $0x7c] sm:$0xf] %v2010
        $region68: #{tpu_custom_call.1} parent=39 // pred_fallthru
          _
        %s2075 = sand.u32 %s173, 1
        %s2076 = scalar_lea.sflag [#allocation5], %s2075
        %s2077 = sand.u32 %s173, 1
        %s2078 = smul.addr %s2077, 256
        %s2079 = scalar_lea.vmem [#allocation12], %s2078
        %s2080 = sand.u32 %s199, 1
        %s2081 = scalar_lea.sflag [#allocation14], %s2080
        %s2082 = sand.u32 %s199, 1
        %s2083 = smul.addr %s2082, 128
        %s2084 = scalar_lea.vmem [#allocation13], %s2083
        // Predicated region
        $region69: #{tpu_custom_call.1} parent=39 // pred_check
          %p2085 = pneg %p183
        $region70: #{tpu_custom_call.1} parent=39 // pred_check_branch
          %2087 = sbr.rel (%p2085) target = $region72
        $region71: #{tpu_custom_call.1} parent=39 // pred_region
          %s2088 = smul.u32 32, %s35
          %s2090 = ssub.s32 4096, 4096
          %2091 = vsyncadd %s2076, %s2090
          %s2092 = smul.addr %s2088, 128
          %s2093 = scalar_lea.hbm %s5, %s2092
          %s2094 = sshll.u32 %s2079, 4
          %s2095 = int_to_ptr.vmem [resolvable:$true] %s2094
          %2100 = dma.vmem_to_hbm [thread:$0]  %s2095, 4096, %s2093, %s2076, 128, 128, 8
        $region72: #{tpu_custom_call.1} parent=39 // pred_fallthru
          _
        // Predicated region
        $region73: #{tpu_custom_call.1} parent=39 // pred_check
          %p2101 = pneg %p209
        $region74: #{tpu_custom_call.1} parent=39 // pred_check_branch
          %2103 = sbr.rel (%p2101) target = $region76
        $region75: #{tpu_custom_call.1} parent=39 // pred_region
          %s2104 = smul.u32 32, %s35
          %s2106 = ssub.s32 2048, 2048
          %2107 = vsyncadd %s2081, %s2106
          %s2108 = smul.addr %s2104, 64
          %s2109 = scalar_lea.hbm %s6, %s2108
          %s2110 = sshll.u32 %s2084, 4
          %s2111 = int_to_ptr.vmem [resolvable:$true] %s2110
          %2116 = dma.vmem_to_hbm [thread:$0]  %s2111, 2048, %s2109, %s2081, 64, 64, 4
        $region76: #{tpu_custom_call.1} parent=39 // pred_fallthru
          _
      $region40: #{tpu_custom_call.1} parent=5 // pred_fallthru
        _
      %p2117 = scmp.le.s32.totalorder 2, %s26
      // Predicated region
      $region77: #{tpu_custom_call.1} parent=5 // pred_check
        %p2118 = pneg %p2117
      $region78: #{tpu_custom_call.1} parent=5 // pred_check_branch
        %2120 = sbr.rel (%p2118) target = $region80
      $region79: #{tpu_custom_call.1} parent=5 // pred_region
        %s2121 = ssub.s32 %s26, 2
        // Predicated region
        $region81: #{tpu_custom_call.1} parent=79 // pred_check
          %p2122 = pneg %p189
        $region82: #{tpu_custom_call.1} parent=79 // pred_check_branch
          %2124 = sbr.rel (%p2122) target = $region84
        $region83: #{tpu_custom_call.1} parent=79 // pred_region
          %s2125 = sand.u32 %s174, 1
          %s2126 = scalar_lea.sflag [#allocation5], %s2125
          %s2127 = sand.u32 %s174, 1
          %s2128 = smul.addr %s2127, 256
          %s2129 = scalar_lea.vmem [#allocation12], %s2128
          %2130 = dma.done %s2126, 4096
        $region84: #{tpu_custom_call.1} parent=79 // pred_fallthru
          _
        // Predicated region
        $region85: #{tpu_custom_call.1} parent=79 // pred_check
          %p2131 = pneg %p215
        $region86: #{tpu_custom_call.1} parent=79 // pred_check_branch
          %2133 = sbr.rel (%p2131) target = $region88
        $region87: #{tpu_custom_call.1} parent=79 // pred_region
          %s2134 = sand.u32 %s200, 1
          %s2135 = scalar_lea.sflag [#allocation14], %s2134
          %s2136 = sand.u32 %s200, 1
          %s2137 = smul.addr %s2136, 128
          %s2138 = scalar_lea.vmem [#allocation13], %s2137
          %2139 = dma.done %s2135, 2048
        $region88: #{tpu_custom_call.1} parent=79 // pred_fallthru
          _
      $region80: #{tpu_custom_call.1} parent=5 // pred_fallthru
        _
    $region6: #{tpu_custom_call.1} parent=1 // loop_footer
      %s30 = sadd.s32 1, %s26
    $region7: #{tpu_custom_call.1} parent=1 // loop_footer_branch
      %25 = sbr.rel target = $region3
    $region8: #{tpu_custom_call.1} parent=1 // loop_exit
      _
    %2140 = vsyncpa [#allocation4], 1
    %s2141 = scalar_lea.sflag [#allocation4], 1
    %2142 = vsyncpa %s2141, 1
    %2143 = vsyncpa [#allocation7], 1
    %s2144 = scalar_lea.sflag [#allocation7], 1
    %2145 = vsyncpa %s2144, 1
    %2146 = vsyncpa [#allocation10], 1
    %2147 = vsyncpa [#allocation5], 1
    %s2148 = scalar_lea.sflag [#allocation5], 1
    %2149 = vsyncpa %s2148, 1
    %2150 = vsyncpa [#allocation14], 1
    %s2151 = scalar_lea.sflag [#allocation14], 1
    %2152 = vsyncpa %s2151, 1

</llo_original>
